<compile_context>
chip_gen: v6e
topology: v6e:2x2x1
jax: 0.10.0
libtpu: 0.0.40
codegen_flags: <defaults>
</compile_context>

<pallas_src>
import functools
import numpy as np
import jax
import jax.numpy as jnp
from jax import lax
from jax.experimental import pallas as pl
from jax.experimental.pallas import tpu as pltpu

LN_EPS = 1e-5  # torch.nn.LayerNorm default


def _attention_block_kernel(x_ref, ln1w_ref, ln1b_ref,
                            wqkv_ref, wo_g_ref, bo_ref,
                            ln2w_ref, ln2b_ref,
                            w1_ref, b1_ref, w2_ref, b2_ref,
                            o_ref, *, n_batch, seq_len, n_head, d_k):
    """Single invocation: the whole (B*S, C) problem is resident in VMEM."""
    B, S, H, dk = n_batch, seq_len, n_head, d_k
    f32, bf16 = jnp.float32, jnp.bfloat16

    x = x_ref[...]                                   # (M, C) f32, M = B*S
    M, C = x.shape

    # ---- pre_attn_norm: one-pass LayerNorm statistics ----
    mu = jnp.mean(x, axis=-1, keepdims=True)
    ms = jnp.mean(x * x, axis=-1, keepdims=True)
    h = (x - mu) * lax.rsqrt(ms - mu * mu + LN_EPS) * ln1w_ref[...] + ln1b_ref[...]

    # ---- fused QKV projection: a single MXU push with N = 3C ----
    qkv = jnp.dot(h.astype(bf16), wqkv_ref[...],
                  preferred_element_type=f32)        # (M, 3C) f32
    scale = 1.0 / np.sqrt(dk)
    q_all = qkv[:, 0 * C:1 * C] * scale              # fold 1/sqrt(d_k) into q
    k_all = qkv[:, 1 * C:2 * C]
    v_all = qkv[:, 2 * C:3 * C]

    # ---- head-major stacks (B*H, S, d_k): static slices + leading-axis stack
    def head_stack(t):
        parts = []
        for b in range(B):
            rows = t[b * S:(b + 1) * S, :]           # sublane slice (S, C)
            for hh in range(H):
                parts.append(rows[:, hh * dk:(hh + 1) * dk])
        return jnp.stack(parts, axis=0)              # (G, S, dk), G = B*H

    qh = head_stack(q_all).astype(bf16)
    kh = head_stack(k_all).astype(bf16)
    vh = head_stack(v_all).astype(bf16)

    # ---- scores for all (batch, head) pairs in one batched MXU op ----
    s = jnp.einsum('gqd,gkd->gqk', qh, kh,
                   preferred_element_type=f32)       # (G, S, S) f32

    # additive causal bias (0 / -1e30), built once, broadcast over G
    row = lax.broadcasted_iota(jnp.int32, (S, S), 0)
    col = lax.broadcasted_iota(jnp.int32, (S, S), 1)
    bias = jnp.where(col <= row, 0.0, -1e30).astype(f32)
    s = s + bias[None, :, :]

    # ---- softmax, vectorized over all heads (f32; EUP reciprocal) ----
    m = jnp.max(s, axis=-1, keepdims=True)
    p = jnp.exp(s - m)
    l = jnp.sum(p, axis=-1, keepdims=True)
    attn = p * pl.reciprocal(l, approx=True)

    # ---- attn @ V, batched over (batch, head) ----
    av = jnp.einsum('gqk,gkd->gqd', attn.astype(bf16), vh,
                    preferred_element_type=f32)      # (G, S, dk) f32

    # ---- output projection with the head merge folded in (no lane concat):
    #      wo_g is wo reshaped to (H, dk, C) and tiled over B -> (G, dk, C)
    og = jnp.einsum('gqd,gdc->gqc', av.astype(bf16), wo_g_ref[...],
                    preferred_element_type=f32)      # (G, S, C) f32
    a_rows = []
    for b in range(B):
        acc = og[b * H]
        for hh in range(1, H):
            acc = acc + og[b * H + hh]               # sum head contributions
        a_rows.append(acc)                           # (S, C)
    a = jnp.concatenate(a_rows, axis=0) + bo_ref[...]   # (M, C)

    # ---- residual 1 ----
    x1 = x + a

    # ---- pre_fc_norm (one-pass stats) + fc_block (Linear->GeLU2->Linear) ----
    mu2 = jnp.mean(x1, axis=-1, keepdims=True)
    ms2 = jnp.mean(x1 * x1, axis=-1, keepdims=True)
    h2 = (x1 - mu2) * lax.rsqrt(ms2 - mu2 * mu2 + LN_EPS) * ln2w_ref[...] + ln2b_ref[...]

    u = jnp.dot(h2.astype(bf16), w1_ref[...], preferred_element_type=f32) + b1_ref[...]
    u = jax.nn.sigmoid(1.702 * u) * u                # GeLU2 in f32
    u = jnp.dot(u.astype(bf16), w2_ref[...], preferred_element_type=f32) + b2_ref[...]

    # TODO(synk): lane-dense ((M*C//128, 128)) output layout skipped; at these
    #             sizes the masked-store cost of a 32-wide last dim is noise.
    o_ref[...] = x1 + u


def attention_block_pallas(x, params, *, n_head):
    """x: (B, d1, ..., dn, C) float32. Returns the same shape."""
    B = x.shape[0]
    C = x.shape[-1]
    spatial = x.shape[1:-1]
    S = int(np.prod(spatial))
    M = B * S
    dk = C // n_head
    f32, bf16 = jnp.float32, jnp.bfloat16

    # One-time weight restructuring (wrapper side, outside the kernel):
    #   - fuse wq|wk|wv into a single (C, 3C) matrix
    #   - reshape wo to per-head (H, dk, C) and tile over B so the head merge
    #     folds into one batched dot inside the kernel
    #   - matmul weights in bf16; biases / LayerNorm params stay f32
    wqkv = jnp.concatenate([params["wq"], params["wk"], params["wv"]],
                           axis=1).astype(bf16)                    # (C, 3C)
    wo_g = jnp.tile(params["wo"].reshape(n_head, dk, C).astype(bf16),
                    (B, 1, 1))                                     # (B*H, dk, C)
    w1 = params["w1"].astype(bf16)
    w2 = params["w2"].astype(bf16)

    x2d = x.reshape(M, C).astype(f32)   # fold batch into the matmul M dim

    kernel = functools.partial(_attention_block_kernel,
                               n_batch=B, seq_len=S, n_head=n_head, d_k=dk)

    # Single invocation (no grid): everything fits comfortably in VMEM at these
    # sizes and per-grid-step pipeline overhead (~0.35 us/step) would dominate
    # the tiny per-batch compute.  All operands are placed whole in VMEM.
    out2d = pl.pallas_call(
        kernel,
        out_shape=jax.ShapeDtypeStruct((M, C), f32),
    )(x2d,
      params["ln1_w"], params["ln1_b"],
      wqkv, wo_g, params["bo"],
      params["ln2_w"], params["ln2_b"],
      w1, params["b1"], w2, params["b2"])

    return out2d.reshape(x.shape)


# ---------------- pure-JAX reference (mirrors the PyTorch forward) -----------
def attention_block_ref(x, params, *, n_head, matmul_dtype=jnp.float32):
    """Reference forward.

    matmul_dtype=jnp.float32  -> the exact (f32) PyTorch AttentionBlock forward.
    matmul_dtype=jnp.bfloat16 -> same algorithm with matmul operands cast to
    bf16 and f32 accumulation, mirroring the kernel's mixed-precision numerics.
    (Folding 1/sqrt(d_k) into q is mathematically identical to scaling scores.)
    """
    B = x.shape[0]
    C = x.shape[-1]
    spatial = x.shape[1:-1]
    S = int(np.prod(spatial))
    dk = C // n_head
    md = matmul_dtype

    def mm(a, b):
        return jnp.matmul(a.astype(md), b.astype(md),
                          preferred_element_type=jnp.float32)

    def ln(t, w, b):
        mu = jnp.mean(t, axis=-1, keepdims=True)
        var = jnp.mean((t - mu) ** 2, axis=-1, keepdims=True)
        return (t - mu) / jnp.sqrt(var + LN_EPS) * w + b

    xf = x.reshape(B, S, C).astype(jnp.float32)

    h = ln(xf, params["ln1_w"], params["ln1_b"])
    q = mm(h, params["wq"]) * (1.0 / np.sqrt(dk))
    k = mm(h, params["wk"])
    v = mm(h, params["wv"])
    q = q.reshape(B, S, n_head, dk).transpose(0, 2, 1, 3)
    k = k.reshape(B, S, n_head, dk).transpose(0, 2, 1, 3)
    v = v.reshape(B, S, n_head, dk).transpose(0, 2, 1, 3)
    s = jnp.einsum("bhqd,bhkd->bhqk", q.astype(md), k.astype(md),
                   preferred_element_type=jnp.float32)
    causal = jnp.tril(jnp.ones((S, S), dtype=bool))
    s = jnp.where(causal, s, -1e30)
    attn = jax.nn.softmax(s, axis=-1)
    av = jnp.einsum("bhqk,bhkd->bhqd", attn.astype(md), v.astype(md),
                    preferred_element_type=jnp.float32)
    a = av.transpose(0, 2, 1, 3).reshape(B, S, C)
    a = mm(a, params["wo"]) + params["bo"]
    x1 = xf + a
    h2 = ln(x1, params["ln2_w"], params["ln2_b"])
    u = mm(h2, params["w1"]) + params["b1"]
    u = jax.nn.sigmoid(1.702 * u) * u
    u = mm(u, params["w2"]) + params["b2"]
    return (x1 + u).reshape(x.shape)


# ---------------- deterministic parameter construction -----------------------
def make_params(key, embd_dim, n_layer):
    C = embd_dim
    ks = jax.random.split(key, 10)
    f32 = jnp.float32
    return {
        # LayerNorm params (torch default is ones/zeros; perturb to exercise them)
        "ln1_w": 1.0 + 0.05 * jax.random.normal(ks[0], (1, C), f32),
        "ln1_b": 0.05 * jax.random.normal(ks[1], (1, C), f32),
        "ln2_w": 1.0 + 0.05 * jax.random.normal(ks[2], (1, C), f32),
        "ln2_b": 0.05 * jax.random.normal(ks[3], (1, C), f32),
        # attention projections, stored (in, out); std matches the torch init
        "wq": jax.random.normal(ks[4], (C, C), f32) / np.sqrt(C),
        "wk": jax.random.normal(ks[5], (C, C), f32) / np.sqrt(C),
        "wv": jax.random.normal(ks[6], (C, C), f32) / np.sqrt(C),
        "wo": jax.random.normal(ks[7], (C, C), f32) / np.sqrt(C * n_layer),
        "bo": 0.02 * jax.random.normal(ks[8], (1, C), f32),
        # fc_block
        "w1": 0.02 * jax.random.normal(ks[9], (C, 4 * C), f32),
        "b1": jnp.zeros((1, 4 * C), f32),
        "w2": 0.02 * jax.random.normal(jax.random.fold_in(key, 99), (4 * C, C), f32),
        "b2": jnp.zeros((1, C), f32),
    }


if __name__ == "__main__":
    # Module config: shape=(2,4,4), embd_dim=32, n_head=4, n_layer=1,
    # dropout=0, attn_type='full', dist_mask=False, attn_dropout=0,
    # frame_cond_shape=None.  Eval mode, decode_step=None.
    shape = (2, 4, 4)
    B, C, n_head, n_layer = 2, 32, 4, 1

    key = jax.random.PRNGKey(0)
    kx, kp = jax.random.split(key)
    x = jax.random.normal(kx, (B, *shape, C), jnp.float32)   # [b, d1..dn, c]
    params = make_params(kp, C, n_layer)

    out = attention_block_pallas(x, params, n_head=n_head)
    jax.block_until_ready(out)

    # (1) tight check against the pure-JAX mirror of the kernel's numerics
    #     (bf16 matmul operands, f32 accumulation / elementwise).
    ref_mixed = attention_block_ref(x, params, n_head=n_head,
                                    matmul_dtype=jnp.bfloat16)
    np.testing.assert_allclose(np.asarray(out), np.asarray(ref_mixed),
                               rtol=1e-2, atol=1e-2)
    # (2) looser check against the full-f32 PyTorch-faithful forward; the gap
    #     is bf16 quantization of the matmul operands.
    ref_f32 = attention_block_ref(x, params, n_head=n_head,
                                  matmul_dtype=jnp.float32)
    np.testing.assert_allclose(np.asarray(out), np.asarray(ref_f32),
                               rtol=1e-1, atol=1e-1)

    print("KERNEL_OK")
</pallas_src>

<mosaic_0001>
module attributes {stable_mosaic.version = 11 : i64} {
  func.func @_attention_block_kernel(%arg0: memref<64x32xf32, #tpu.memory_space<vmem>>, %arg1: memref<1x32xf32, #tpu.memory_space<vmem>>, %arg2: memref<1x32xf32, #tpu.memory_space<vmem>>, %arg3: memref<32x96xbf16, #tpu.memory_space<vmem>>, %arg4: memref<8x8x32xbf16, #tpu.memory_space<vmem>>, %arg5: memref<1x32xf32, #tpu.memory_space<vmem>>, %arg6: memref<1x32xf32, #tpu.memory_space<vmem>>, %arg7: memref<1x32xf32, #tpu.memory_space<vmem>>, %arg8: memref<32x128xbf16, #tpu.memory_space<vmem>>, %arg9: memref<1x128xf32, #tpu.memory_space<vmem>>, %arg10: memref<128x32xbf16, #tpu.memory_space<vmem>>, %arg11: memref<1x32xf32, #tpu.memory_space<vmem>>, %arg12: memref<64x32xf32, #tpu.memory_space<vmem>>) attributes {dimension_semantics = [], scalar_prefetch = 0 : i64, scratch_operands = 0 : i64, tpu.core_type = #tpu.core_type<tc>} {
    %c0 = arith.constant 0 : index
    %c0_0 = arith.constant 0 : index
    %0 = vector.load %arg0[%c0, %c0_0] : memref<64x32xf32, #tpu.memory_space<vmem>>, vector<64x32xf32>
    %cst = arith.constant dense<0.000000e+00> : vector<64xf32>
    %1 = vector.multi_reduction <add>, %0, %cst [1] : vector<64x32xf32> to vector<64xf32>
    %2 = vector.shape_cast %1 : vector<64xf32> to vector<64x1xf32>
    %cst_1 = arith.constant 3.200000e+01 : f32
    %3 = vector.broadcast %cst_1 : f32 to vector<64x1xf32>
    %4 = arith.divf %2, %3 : vector<64x1xf32>
    %5 = arith.mulf %0, %0 : vector<64x32xf32>
    %cst_2 = arith.constant dense<0.000000e+00> : vector<64xf32>
    %6 = vector.multi_reduction <add>, %5, %cst_2 [1] : vector<64x32xf32> to vector<64xf32>
    %7 = vector.shape_cast %6 : vector<64xf32> to vector<64x1xf32>
    %cst_3 = arith.constant 3.200000e+01 : f32
    %8 = vector.broadcast %cst_3 : f32 to vector<64x1xf32>
    %9 = arith.divf %7, %8 : vector<64x1xf32>
    %10 = vector.broadcast %4 : vector<64x1xf32> to vector<64x32xf32>
    %11 = arith.subf %0, %10 : vector<64x32xf32>
    %12 = arith.mulf %4, %4 : vector<64x1xf32>
    %13 = arith.subf %9, %12 : vector<64x1xf32>
    %cst_4 = arith.constant 9.99999974E-6 : f32
    %14 = vector.broadcast %cst_4 : f32 to vector<64x1xf32>
    %15 = arith.addf %13, %14 : vector<64x1xf32>
    %16 = math.rsqrt %15 : vector<64x1xf32>
    %17 = vector.broadcast %16 : vector<64x1xf32> to vector<64x32xf32>
    %18 = arith.mulf %11, %17 : vector<64x32xf32>
    %c0_5 = arith.constant 0 : index
    %c0_6 = arith.constant 0 : index
    %19 = vector.load %arg1[%c0_5, %c0_6] : memref<1x32xf32, #tpu.memory_space<vmem>>, vector<1x32xf32>
    %20 = vector.broadcast %19 : vector<1x32xf32> to vector<64x32xf32>
    %21 = arith.mulf %18, %20 : vector<64x32xf32>
    %c0_7 = arith.constant 0 : index
    %c0_8 = arith.constant 0 : index
    %22 = vector.load %arg2[%c0_7, %c0_8] : memref<1x32xf32, #tpu.memory_space<vmem>>, vector<1x32xf32>
    %23 = vector.broadcast %22 : vector<1x32xf32> to vector<64x32xf32>
    %24 = arith.addf %21, %23 : vector<64x32xf32>
    %25 = arith.truncf %24 : vector<64x32xf32> to vector<64x32xbf16>
    %c0_9 = arith.constant 0 : index
    %c0_10 = arith.constant 0 : index
    %26 = vector.load %arg3[%c0_9, %c0_10] : memref<32x96xbf16, #tpu.memory_space<vmem>>, vector<32x96xbf16>
    %cst_11 = arith.constant dense<0.000000e+00> : vector<64x96xf32>
    %27 = tpu.matmul %25, %26, %cst_11 {dimension_numbers = #tpu.dot_dimension_numbers<[1], [0], [0], [1], [0, 0, 1, 1], [], []>} : vector<64x32xbf16>, vector<32x96xbf16>, vector<64x96xf32> -> vector<64x96xf32>
    %28 = vector.extract_strided_slice %27 {offsets = [0, 0], sizes = [64, 32], strides = [1, 1]} : vector<64x96xf32> to vector<64x32xf32>
    %cst_12 = arith.constant 0.353553385 : f32
    %29 = vector.broadcast %cst_12 : f32 to vector<64x32xf32>
    %30 = arith.mulf %28, %29 : vector<64x32xf32>
    %31 = vector.extract_strided_slice %27 {offsets = [0, 32], sizes = [64, 32], strides = [1, 1]} : vector<64x96xf32> to vector<64x32xf32>
    %32 = vector.extract_strided_slice %27 {offsets = [0, 64], sizes = [64, 32], strides = [1, 1]} : vector<64x96xf32> to vector<64x32xf32>
    %33 = vector.extract_strided_slice %30 {offsets = [0, 0], sizes = [32, 32], strides = [1, 1]} : vector<64x32xf32> to vector<32x32xf32>
    %34 = vector.extract_strided_slice %33 {offsets = [0, 0], sizes = [32, 8], strides = [1, 1]} : vector<32x32xf32> to vector<32x8xf32>
    %35 = vector.extract_strided_slice %33 {offsets = [0, 8], sizes = [32, 8], strides = [1, 1]} : vector<32x32xf32> to vector<32x8xf32>
    %36 = vector.extract_strided_slice %33 {offsets = [0, 16], sizes = [32, 8], strides = [1, 1]} : vector<32x32xf32> to vector<32x8xf32>
    %37 = vector.extract_strided_slice %33 {offsets = [0, 24], sizes = [32, 8], strides = [1, 1]} : vector<32x32xf32> to vector<32x8xf32>
    %38 = vector.extract_strided_slice %30 {offsets = [32, 0], sizes = [32, 32], strides = [1, 1]} : vector<64x32xf32> to vector<32x32xf32>
    %39 = vector.extract_strided_slice %38 {offsets = [0, 0], sizes = [32, 8], strides = [1, 1]} : vector<32x32xf32> to vector<32x8xf32>
    %40 = vector.extract_strided_slice %38 {offsets = [0, 8], sizes = [32, 8], strides = [1, 1]} : vector<32x32xf32> to vector<32x8xf32>
    %41 = vector.extract_strided_slice %38 {offsets = [0, 16], sizes = [32, 8], strides = [1, 1]} : vector<32x32xf32> to vector<32x8xf32>
    %42 = vector.extract_strided_slice %38 {offsets = [0, 24], sizes = [32, 8], strides = [1, 1]} : vector<32x32xf32> to vector<32x8xf32>
    %43 = vector.shape_cast %34 : vector<32x8xf32> to vector<1x32x8xf32>
    %44 = vector.shape_cast %35 : vector<32x8xf32> to vector<1x32x8xf32>
    %45 = vector.shape_cast %36 : vector<32x8xf32> to vector<1x32x8xf32>
    %46 = vector.shape_cast %37 : vector<32x8xf32> to vector<1x32x8xf32>
    %47 = vector.shape_cast %39 : vector<32x8xf32> to vector<1x32x8xf32>
    %48 = vector.shape_cast %40 : vector<32x8xf32> to vector<1x32x8xf32>
    %49 = vector.shape_cast %41 : vector<32x8xf32> to vector<1x32x8xf32>
    %50 = vector.shape_cast %42 : vector<32x8xf32> to vector<1x32x8xf32>
    %51 = tpu.concatenate %43, %44, %45, %46, %47, %48, %49, %50 in 0 : vector<1x32x8xf32>, vector<1x32x8xf32>, vector<1x32x8xf32>, vector<1x32x8xf32>, vector<1x32x8xf32>, vector<1x32x8xf32>, vector<1x32x8xf32>, vector<1x32x8xf32> -> vector<8x32x8xf32>
    %52 = arith.truncf %51 : vector<8x32x8xf32> to vector<8x32x8xbf16>
    %53 = vector.extract_strided_slice %31 {offsets = [0, 0], sizes = [32, 32], strides = [1, 1]} : vector<64x32xf32> to vector<32x32xf32>
    %54 = vector.extract_strided_slice %53 {offsets = [0, 0], sizes = [32, 8], strides = [1, 1]} : vector<32x32xf32> to vector<32x8xf32>
    %55 = vector.extract_strided_slice %53 {offsets = [0, 8], sizes = [32, 8], strides = [1, 1]} : vector<32x32xf32> to vector<32x8xf32>
    %56 = vector.extract_strided_slice %53 {offsets = [0, 16], sizes = [32, 8], strides = [1, 1]} : vector<32x32xf32> to vector<32x8xf32>
    %57 = vector.extract_strided_slice %53 {offsets = [0, 24], sizes = [32, 8], strides = [1, 1]} : vector<32x32xf32> to vector<32x8xf32>
    %58 = vector.extract_strided_slice %31 {offsets = [32, 0], sizes = [32, 32], strides = [1, 1]} : vector<64x32xf32> to vector<32x32xf32>
    %59 = vector.extract_strided_slice %58 {offsets = [0, 0], sizes = [32, 8], strides = [1, 1]} : vector<32x32xf32> to vector<32x8xf32>
    %60 = vector.extract_strided_slice %58 {offsets = [0, 8], sizes = [32, 8], strides = [1, 1]} : vector<32x32xf32> to vector<32x8xf32>
    %61 = vector.extract_strided_slice %58 {offsets = [0, 16], sizes = [32, 8], strides = [1, 1]} : vector<32x32xf32> to vector<32x8xf32>
    %62 = vector.extract_strided_slice %58 {offsets = [0, 24], sizes = [32, 8], strides = [1, 1]} : vector<32x32xf32> to vector<32x8xf32>
    %63 = vector.shape_cast %54 : vector<32x8xf32> to vector<1x32x8xf32>
    %64 = vector.shape_cast %55 : vector<32x8xf32> to vector<1x32x8xf32>
    %65 = vector.shape_cast %56 : vector<32x8xf32> to vector<1x32x8xf32>
    %66 = vector.shape_cast %57 : vector<32x8xf32> to vector<1x32x8xf32>
    %67 = vector.shape_cast %59 : vector<32x8xf32> to vector<1x32x8xf32>
    %68 = vector.shape_cast %60 : vector<32x8xf32> to vector<1x32x8xf32>
    %69 = vector.shape_cast %61 : vector<32x8xf32> to vector<1x32x8xf32>
    %70 = vector.shape_cast %62 : vector<32x8xf32> to vector<1x32x8xf32>
    %71 = tpu.concatenate %63, %64, %65, %66, %67, %68, %69, %70 in 0 : vector<1x32x8xf32>, vector<1x32x8xf32>, vector<1x32x8xf32>, vector<1x32x8xf32>, vector<1x32x8xf32>, vector<1x32x8xf32>, vector<1x32x8xf32>, vector<1x32x8xf32> -> vector<8x32x8xf32>
    %72 = arith.truncf %71 : vector<8x32x8xf32> to vector<8x32x8xbf16>
    %73 = vector.extract_strided_slice %32 {offsets = [0, 0], sizes = [32, 32], strides = [1, 1]} : vector<64x32xf32> to vector<32x32xf32>
    %74 = vector.extract_strided_slice %73 {offsets = [0, 0], sizes = [32, 8], strides = [1, 1]} : vector<32x32xf32> to vector<32x8xf32>
    %75 = vector.extract_strided_slice %73 {offsets = [0, 8], sizes = [32, 8], strides = [1, 1]} : vector<32x32xf32> to vector<32x8xf32>
    %76 = vector.extract_strided_slice %73 {offsets = [0, 16], sizes = [32, 8], strides = [1, 1]} : vector<32x32xf32> to vector<32x8xf32>
    %77 = vector.extract_strided_slice %73 {offsets = [0, 24], sizes = [32, 8], strides = [1, 1]} : vector<32x32xf32> to vector<32x8xf32>
    %78 = vector.extract_strided_slice %32 {offsets = [32, 0], sizes = [32, 32], strides = [1, 1]} : vector<64x32xf32> to vector<32x32xf32>
    %79 = vector.extract_strided_slice %78 {offsets = [0, 0], sizes = [32, 8], strides = [1, 1]} : vector<32x32xf32> to vector<32x8xf32>
    %80 = vector.extract_strided_slice %78 {offsets = [0, 8], sizes = [32, 8], strides = [1, 1]} : vector<32x32xf32> to vector<32x8xf32>
    %81 = vector.extract_strided_slice %78 {offsets = [0, 16], sizes = [32, 8], strides = [1, 1]} : vector<32x32xf32> to vector<32x8xf32>
    %82 = vector.extract_strided_slice %78 {offsets = [0, 24], sizes = [32, 8], strides = [1, 1]} : vector<32x32xf32> to vector<32x8xf32>
    %83 = vector.shape_cast %74 : vector<32x8xf32> to vector<1x32x8xf32>
    %84 = vector.shape_cast %75 : vector<32x8xf32> to vector<1x32x8xf32>
    %85 = vector.shape_cast %76 : vector<32x8xf32> to vector<1x32x8xf32>
    %86 = vector.shape_cast %77 : vector<32x8xf32> to vector<1x32x8xf32>
    %87 = vector.shape_cast %79 : vector<32x8xf32> to vector<1x32x8xf32>
    %88 = vector.shape_cast %80 : vector<32x8xf32> to vector<1x32x8xf32>
    %89 = vector.shape_cast %81 : vector<32x8xf32> to vector<1x32x8xf32>
    %90 = vector.shape_cast %82 : vector<32x8xf32> to vector<1x32x8xf32>
    %91 = tpu.concatenate %83, %84, %85, %86, %87, %88, %89, %90 in 0 : vector<1x32x8xf32>, vector<1x32x8xf32>, vector<1x32x8xf32>, vector<1x32x8xf32>, vector<1x32x8xf32>, vector<1x32x8xf32>, vector<1x32x8xf32>, vector<1x32x8xf32> -> vector<8x32x8xf32>
    %92 = arith.truncf %91 : vector<8x32x8xf32> to vector<8x32x8xbf16>
    "tpu.trace_start"() <{level = 10 : i32, message = "gqd,gkd->gqk"}> : () -> ()
    %cst_13 = arith.constant dense<0.000000e+00> : vector<8x32x32xf32>
    %93 = tpu.matmul %52, %72, %cst_13 {dimension_numbers = #tpu.dot_dimension_numbers<[2], [2], [1], [1], [0, 0, 0, 1, 1, 1], [0], [0]>} : vector<8x32x8xbf16>, vector<8x32x8xbf16>, vector<8x32x32xf32> -> vector<8x32x32xf32>
    "tpu.trace_stop"() : () -> ()
    %94 = tpu.iota {dimensions = array<i32: 0>} : vector<32x32xi32>
    %95 = tpu.iota {dimensions = array<i32: 1>} : vector<32x32xi32>
    %96 = arith.cmpi sle, %95, %94 : vector<32x32xi32>
    %cst_14 = arith.constant 0.000000e+00 : f32
    %cst_15 = arith.constant -1.000000e+30 : f32
    %97 = vector.broadcast %cst_14 : f32 to vector<32x32xf32>
    %98 = vector.broadcast %cst_15 : f32 to vector<32x32xf32>
    %99 = arith.select %96, %97, %98 : vector<32x32xi1>, vector<32x32xf32>
    %100 = vector.shape_cast %99 : vector<32x32xf32> to vector<1x32x32xf32>
    %101 = vector.broadcast %100 : vector<1x32x32xf32> to vector<8x32x32xf32>
    %102 = arith.addf %93, %101 : vector<8x32x32xf32>
    %cst_16 = arith.constant dense<0xFF800000> : vector<8x32xf32>
    %103 = vector.multi_reduction <maximumf>, %102, %cst_16 [2] : vector<8x32x32xf32> to vector<8x32xf32>
    %104 = vector.shape_cast %103 : vector<8x32xf32> to vector<8x32x1xf32>
    %105 = vector.broadcast %104 : vector<8x32x1xf32> to vector<8x32x32xf32>
    %106 = arith.subf %102, %105 : vector<8x32x32xf32>
    %107 = math.exp %106 : vector<8x32x32xf32>
    %cst_17 = arith.constant dense<0.000000e+00> : vector<8x32xf32>
    %108 = vector.multi_reduction <add>, %107, %cst_17 [2] : vector<8x32x32xf32> to vector<8x32xf32>
    %109 = vector.shape_cast %108 : vector<8x32xf32> to vector<8x32x1xf32>
    %110 = tpu.reciprocal %109 {approx = true} : vector<8x32x1xf32> -> vector<8x32x1xf32>
    %111 = vector.broadcast %110 : vector<8x32x1xf32> to vector<8x32x32xf32>
    %112 = arith.mulf %107, %111 : vector<8x32x32xf32>
    %113 = arith.truncf %112 : vector<8x32x32xf32> to vector<8x32x32xbf16>
    "tpu.trace_start"() <{level = 10 : i32, message = "gqk,gkd->gqd"}> : () -> ()
    %cst_18 = arith.constant dense<0.000000e+00> : vector<8x32x8xf32>
    %114 = tpu.matmul %113, %92, %cst_18 {dimension_numbers = #tpu.dot_dimension_numbers<[2], [1], [1], [2], [0, 0, 0, 1, 1, 2], [0], [0]>} : vector<8x32x32xbf16>, vector<8x32x8xbf16>, vector<8x32x8xf32> -> vector<8x32x8xf32>
    "tpu.trace_stop"() : () -> ()
    %115 = arith.truncf %114 : vector<8x32x8xf32> to vector<8x32x8xbf16>
    %c0_19 = arith.constant 0 : index
    %c0_20 = arith.constant 0 : index
    %c0_21 = arith.constant 0 : index
    %116 = vector.load %arg4[%c0_19, %c0_20, %c0_21] : memref<8x8x32xbf16, #tpu.memory_space<vmem>>, vector<8x8x32xbf16>
    "tpu.trace_start"() <{level = 10 : i32, message = "gqd,gdc->gqc"}> : () -> ()
    %cst_22 = arith.constant dense<0.000000e+00> : vector<8x32x32xf32>
    %117 = tpu.matmul %115, %116, %cst_22 {dimension_numbers = #tpu.dot_dimension_numbers<[2], [1], [1], [2], [0, 0, 0, 1, 1, 2], [0], [0]>} : vector<8x32x8xbf16>, vector<8x8x32xbf16>, vector<8x32x32xf32> -> vector<8x32x32xf32>
    "tpu.trace_stop"() : () -> ()
    %118 = vector.extract_strided_slice %117 {offsets = [0, 0, 0], sizes = [1, 32, 32], strides = [1, 1, 1]} : vector<8x32x32xf32> to vector<1x32x32xf32>
    %119 = vector.shape_cast %118 : vector<1x32x32xf32> to vector<32x32xf32>
    %120 = vector.extract_strided_slice %117 {offsets = [1, 0, 0], sizes = [1, 32, 32], strides = [1, 1, 1]} : vector<8x32x32xf32> to vector<1x32x32xf32>
    %121 = vector.shape_cast %120 : vector<1x32x32xf32> to vector<32x32xf32>
    %122 = arith.addf %119, %121 : vector<32x32xf32>
    %123 = vector.extract_strided_slice %117 {offsets = [2, 0, 0], sizes = [1, 32, 32], strides = [1, 1, 1]} : vector<8x32x32xf32> to vector<1x32x32xf32>
    %124 = vector.shape_cast %123 : vector<1x32x32xf32> to vector<32x32xf32>
    %125 = arith.addf %122, %124 : vector<32x32xf32>
    %126 = vector.extract_strided_slice %117 {offsets = [3, 0, 0], sizes = [1, 32, 32], strides = [1, 1, 1]} : vector<8x32x32xf32> to vector<1x32x32xf32>
    %127 = vector.shape_cast %126 : vector<1x32x32xf32> to vector<32x32xf32>
    %128 = arith.addf %125, %127 : vector<32x32xf32>
    %129 = vector.extract_strided_slice %117 {offsets = [4, 0, 0], sizes = [1, 32, 32], strides = [1, 1, 1]} : vector<8x32x32xf32> to vector<1x32x32xf32>
    %130 = vector.shape_cast %129 : vector<1x32x32xf32> to vector<32x32xf32>
    %131 = vector.extract_strided_slice %117 {offsets = [5, 0, 0], sizes = [1, 32, 32], strides = [1, 1, 1]} : vector<8x32x32xf32> to vector<1x32x32xf32>
    %132 = vector.shape_cast %131 : vector<1x32x32xf32> to vector<32x32xf32>
    %133 = arith.addf %130, %132 : vector<32x32xf32>
    %134 = vector.extract_strided_slice %117 {offsets = [6, 0, 0], sizes = [1, 32, 32], strides = [1, 1, 1]} : vector<8x32x32xf32> to vector<1x32x32xf32>
    %135 = vector.shape_cast %134 : vector<1x32x32xf32> to vector<32x32xf32>
    %136 = arith.addf %133, %135 : vector<32x32xf32>
    %137 = vector.extract_strided_slice %117 {offsets = [7, 0, 0], sizes = [1, 32, 32], strides = [1, 1, 1]} : vector<8x32x32xf32> to vector<1x32x32xf32>
    %138 = vector.shape_cast %137 : vector<1x32x32xf32> to vector<32x32xf32>
    %139 = arith.addf %136, %138 : vector<32x32xf32>
    %140 = tpu.concatenate %128, %139 in 0 : vector<32x32xf32>, vector<32x32xf32> -> vector<64x32xf32>
    %c0_23 = arith.constant 0 : index
    %c0_24 = arith.constant 0 : index
    %141 = vector.load %arg5[%c0_23, %c0_24] : memref<1x32xf32, #tpu.memory_space<vmem>>, vector<1x32xf32>
    %142 = vector.broadcast %141 : vector<1x32xf32> to vector<64x32xf32>
    %143 = arith.addf %140, %142 : vector<64x32xf32>
    %144 = arith.addf %0, %143 : vector<64x32xf32>
    %cst_25 = arith.constant dense<0.000000e+00> : vector<64xf32>
    %145 = vector.multi_reduction <add>, %144, %cst_25 [1] : vector<64x32xf32> to vector<64xf32>
    %146 = vector.shape_cast %145 : vector<64xf32> to vector<64x1xf32>
    %cst_26 = arith.constant 3.200000e+01 : f32
    %147 = vector.broadcast %cst_26 : f32 to vector<64x1xf32>
    %148 = arith.divf %146, %147 : vector<64x1xf32>
    %149 = arith.mulf %144, %144 : vector<64x32xf32>
    %cst_27 = arith.constant dense<0.000000e+00> : vector<64xf32>
    %150 = vector.multi_reduction <add>, %149, %cst_27 [1] : vector<64x32xf32> to vector<64xf32>
    %151 = vector.shape_cast %150 : vector<64xf32> to vector<64x1xf32>
    %cst_28 = arith.constant 3.200000e+01 : f32
    %152 = vector.broadcast %cst_28 : f32 to vector<64x1xf32>
    %153 = arith.divf %151, %152 : vector<64x1xf32>
    %154 = vector.broadcast %148 : vector<64x1xf32> to vector<64x32xf32>
    %155 = arith.subf %144, %154 : vector<64x32xf32>
    %156 = arith.mulf %148, %148 : vector<64x1xf32>
    %157 = arith.subf %153, %156 : vector<64x1xf32>
    %cst_29 = arith.constant 9.99999974E-6 : f32
    %158 = vector.broadcast %cst_29 : f32 to vector<64x1xf32>
    %159 = arith.addf %157, %158 : vector<64x1xf32>
    %160 = math.rsqrt %159 : vector<64x1xf32>
    %161 = vector.broadcast %160 : vector<64x1xf32> to vector<64x32xf32>
    %162 = arith.mulf %155, %161 : vector<64x32xf32>
    %c0_30 = arith.constant 0 : index
    %c0_31 = arith.constant 0 : index
    %163 = vector.load %arg6[%c0_30, %c0_31] : memref<1x32xf32, #tpu.memory_space<vmem>>, vector<1x32xf32>
    %164 = vector.broadcast %163 : vector<1x32xf32> to vector<64x32xf32>
    %165 = arith.mulf %162, %164 : vector<64x32xf32>
    %c0_32 = arith.constant 0 : index
    %c0_33 = arith.constant 0 : index
    %166 = vector.load %arg7[%c0_32, %c0_33] : memref<1x32xf32, #tpu.memory_space<vmem>>, vector<1x32xf32>
    %167 = vector.broadcast %166 : vector<1x32xf32> to vector<64x32xf32>
    %168 = arith.addf %165, %167 : vector<64x32xf32>
    %169 = arith.truncf %168 : vector<64x32xf32> to vector<64x32xbf16>
    %c0_34 = arith.constant 0 : index
    %c0_35 = arith.constant 0 : index
    %170 = vector.load %arg8[%c0_34, %c0_35] : memref<32x128xbf16, #tpu.memory_space<vmem>>, vector<32x128xbf16>
    %cst_36 = arith.constant dense<0.000000e+00> : vector<64x128xf32>
    %171 = tpu.matmul %169, %170, %cst_36 {dimension_numbers = #tpu.dot_dimension_numbers<[1], [0], [0], [1], [0, 0, 1, 1], [], []>} : vector<64x32xbf16>, vector<32x128xbf16>, vector<64x128xf32> -> vector<64x128xf32>
    %c0_37 = arith.constant 0 : index
    %c0_38 = arith.constant 0 : index
    %172 = vector.load %arg9[%c0_37, %c0_38] : memref<1x128xf32, #tpu.memory_space<vmem>>, vector<1x128xf32>
    %173 = vector.broadcast %172 : vector<1x128xf32> to vector<64x128xf32>
    %174 = arith.addf %171, %173 : vector<64x128xf32>
    %cst_39 = arith.constant 1.702000e+00 : f32
    %175 = vector.broadcast %cst_39 : f32 to vector<64x128xf32>
    %176 = arith.mulf %175, %174 : vector<64x128xf32>
    %177 = arith.negf %176 : vector<64x128xf32>
    %178 = math.exp %177 : vector<64x128xf32>
    %cst_40 = arith.constant 1.000000e+00 : f32
    %179 = vector.broadcast %cst_40 : f32 to vector<64x128xf32>
    %180 = arith.addf %179, %178 : vector<64x128xf32>
    %181 = arith.divf %179, %180 : vector<64x128xf32>
    %182 = arith.mulf %181, %174 : vector<64x128xf32>
    %183 = arith.truncf %182 : vector<64x128xf32> to vector<64x128xbf16>
    %c0_41 = arith.constant 0 : index
    %c0_42 = arith.constant 0 : index
    %184 = vector.load %arg10[%c0_41, %c0_42] : memref<128x32xbf16, #tpu.memory_space<vmem>>, vector<128x32xbf16>
    %cst_43 = arith.constant dense<0.000000e+00> : vector<64x32xf32>
    %185 = tpu.matmul %183, %184, %cst_43 {dimension_numbers = #tpu.dot_dimension_numbers<[1], [0], [0], [1], [0, 0, 1, 1], [], []>} : vector<64x128xbf16>, vector<128x32xbf16>, vector<64x32xf32> -> vector<64x32xf32>
    %c0_44 = arith.constant 0 : index
    %c0_45 = arith.constant 0 : index
    %186 = vector.load %arg11[%c0_44, %c0_45] : memref<1x32xf32, #tpu.memory_space<vmem>>, vector<1x32xf32>
    %187 = vector.broadcast %186 : vector<1x32xf32> to vector<64x32xf32>
    %188 = arith.addf %185, %187 : vector<64x32xf32>
    %189 = arith.addf %144, %188 : vector<64x32xf32>
    %c0_46 = arith.constant 0 : index
    %c0_47 = arith.constant 0 : index
    %190 = vector.load %arg12[%c0_46, %c0_47] : memref<64x32xf32, #tpu.memory_space<vmem>>, vector<64x32xf32>
    tpu.vector_store %arg12[%c0_46, %c0_47], %189 {strides = array<i32>} : memref<64x32xf32, #tpu.memory_space<vmem>>, vector<64x32xf32>,
    return
  }
}

</mosaic_0001>

<llo_original>
// kernel: tpu_custom_call.1
$region0: #{tpu_custom_call.1}
  #allocation0 [shape = 'u32[]', space=smem, size = 0x4, offset = 0x4, fixed_abs, tag = 'smem constant byte address 0x4 - core index']
  #allocation1 [shape = 'u32[144,128]{1,0:T(1,128)}', space=vmem, size = 0x12000, scoped, tag = 'internal scratch']
  %s0 = inlined_call_operand.vmem [shape: f32[64,32], index: 0, kind: input, shape index: {}]
  %s1 = inlined_call_operand.vmem [shape: f32[1,32], index: 1, kind: input, shape index: {}]
  %s2 = inlined_call_operand.vmem [shape: f32[1,32], index: 2, kind: input, shape index: {}]
  %s3 = inlined_call_operand.vmem [shape: bf16[32,96], index: 3, kind: input, shape index: {}]
  %s4 = inlined_call_operand.vmem [shape: bf16[8,8,32], index: 4, kind: input, shape index: {}]
  %s5 = inlined_call_operand.vmem [shape: f32[1,32], index: 5, kind: input, shape index: {}]
  %s6 = inlined_call_operand.vmem [shape: f32[1,32], index: 6, kind: input, shape index: {}]
  %s7 = inlined_call_operand.vmem [shape: f32[1,32], index: 7, kind: input, shape index: {}]
  %s8 = inlined_call_operand.vmem [shape: bf16[32,128], index: 8, kind: input, shape index: {}]
  %s9 = inlined_call_operand.vmem [shape: f32[1,128], index: 9, kind: input, shape index: {}]
  %s10 = inlined_call_operand.vmem [shape: bf16[128,32], index: 10, kind: input, shape index: {}]
  %s11 = inlined_call_operand.vmem [shape: f32[1,32], index: 11, kind: input, shape index: {}]
  %s12 = inlined_call_operand.vmem [shape: f32[64,32], index: 12, kind: output, shape index: {}]
  %s13 = sld [smem:[#allocation0]]
  $region58: #{tpu_custom_call.1} parent=0
    _
  %s15 = ssub.s32 1, %s13
  %s16 = scalar_select 0, %s15, %s13
  // Predicated region
  $region2: #{tpu_custom_call.1} parent=0 // pred_check
    _
  $region3: #{tpu_custom_call.1} parent=0 // pred_check_branch
    %18 = sbr.rel (0) target = $region5
  $region4: #{tpu_custom_call.1} parent=0 // pred_region
    _
  $region5: #{tpu_custom_call.1} parent=0 // pred_fallthru
    _
  // Predicated region
  $region6: #{tpu_custom_call.1} parent=0 // pred_check
    _
  $region7: #{tpu_custom_call.1} parent=0 // pred_check_branch
    %20 = sbr.rel (0) target = $region9
  $region8: #{tpu_custom_call.1} parent=0 // pred_region
    _
  $region9: #{tpu_custom_call.1} parent=0 // pred_fallthru
    _
  // Predicated region
  $region10: #{tpu_custom_call.1} parent=0 // pred_check
    _
  $region11: #{tpu_custom_call.1} parent=0 // pred_check_branch
    %22 = sbr.rel (0) target = $region13
  $region12: #{tpu_custom_call.1} parent=0 // pred_region
    _
  $region13: #{tpu_custom_call.1} parent=0 // pred_fallthru
    _
  // Predicated region
  $region14: #{tpu_custom_call.1} parent=0 // pred_check
    _
  $region15: #{tpu_custom_call.1} parent=0 // pred_check_branch
    %24 = sbr.rel (0) target = $region17
  $region16: #{tpu_custom_call.1} parent=0 // pred_region
    _
  $region17: #{tpu_custom_call.1} parent=0 // pred_fallthru
    _
  // Predicated region
  $region18: #{tpu_custom_call.1} parent=0 // pred_check
    _
  $region19: #{tpu_custom_call.1} parent=0 // pred_check_branch
    %26 = sbr.rel (0) target = $region21
  $region20: #{tpu_custom_call.1} parent=0 // pred_region
    _
  $region21: #{tpu_custom_call.1} parent=0 // pred_fallthru
    _
  // Predicated region
  $region22: #{tpu_custom_call.1} parent=0 // pred_check
    _
  $region23: #{tpu_custom_call.1} parent=0 // pred_check_branch
    %28 = sbr.rel (0) target = $region25
  $region24: #{tpu_custom_call.1} parent=0 // pred_region
    _
  $region25: #{tpu_custom_call.1} parent=0 // pred_fallthru
    _
  // Predicated region
  $region26: #{tpu_custom_call.1} parent=0 // pred_check
    _
  $region27: #{tpu_custom_call.1} parent=0 // pred_check_branch
    %30 = sbr.rel (0) target = $region29
  $region28: #{tpu_custom_call.1} parent=0 // pred_region
    _
  $region29: #{tpu_custom_call.1} parent=0 // pred_fallthru
    _
  // Predicated region
  $region30: #{tpu_custom_call.1} parent=0 // pred_check
    _
  $region31: #{tpu_custom_call.1} parent=0 // pred_check_branch
    %32 = sbr.rel (0) target = $region33
  $region32: #{tpu_custom_call.1} parent=0 // pred_region
    _
  $region33: #{tpu_custom_call.1} parent=0 // pred_fallthru
    _
  // Predicated region
  $region34: #{tpu_custom_call.1} parent=0 // pred_check
    _
  $region35: #{tpu_custom_call.1} parent=0 // pred_check_branch
    %34 = sbr.rel (0) target = $region37
  $region36: #{tpu_custom_call.1} parent=0 // pred_region
    _
  $region37: #{tpu_custom_call.1} parent=0 // pred_fallthru
    _
  // Predicated region
  $region38: #{tpu_custom_call.1} parent=0 // pred_check
    _
  $region39: #{tpu_custom_call.1} parent=0 // pred_check_branch
    %36 = sbr.rel (0) target = $region41
  $region40: #{tpu_custom_call.1} parent=0 // pred_region
    _
  $region41: #{tpu_custom_call.1} parent=0 // pred_fallthru
    _
  // Predicated region
  $region42: #{tpu_custom_call.1} parent=0 // pred_check
    _
  $region43: #{tpu_custom_call.1} parent=0 // pred_check_branch
    %38 = sbr.rel (0) target = $region45
  $region44: #{tpu_custom_call.1} parent=0 // pred_region
    _
  $region45: #{tpu_custom_call.1} parent=0 // pred_fallthru
    _
  // Predicated region
  $region46: #{tpu_custom_call.1} parent=0 // pred_check
    _
  $region47: #{tpu_custom_call.1} parent=0 // pred_check_branch
    %40 = sbr.rel (0) target = $region49
  $region48: #{tpu_custom_call.1} parent=0 // pred_region
    _
  $region49: #{tpu_custom_call.1} parent=0 // pred_fallthru
    _
  %v42 = vld [vmem:[%s0] sm:$0xff]
  %v43 = vld [vmem:[%s0 + $0x8] sm:$0xff]
  %v44 = vld [vmem:[%s0 + $0x10] sm:$0xff]
  %v45 = vld [vmem:[%s0 + $0x18] sm:$0xff]
  %v46 = vld [vmem:[%s0 + $0x20] sm:$0xff]
  %v47 = vld [vmem:[%s0 + $0x28] sm:$0xff]
  %v48 = vld [vmem:[%s0 + $0x30] sm:$0xff]
  %v49 = vld [vmem:[%s0 + $0x38] sm:$0xff]
  %vm50 = vcmask 261120
  %v51 = vsel %vm50, %v42, 0.0
  %52 = vadd.xlane.f32.xlu0 %v51
  %v53 = vpop.xlane.xlu0 %52
  %v54 = vsel %vm50, %v43, 0.0
  %55 = vadd.xlane.f32.xlu0 %v54
  %v56 = vpop.xlane.xlu0 %55
  %v57 = vsel %vm50, %v44, 0.0
  %58 = vadd.xlane.f32.xlu0 %v57
  %v59 = vpop.xlane.xlu0 %58
  %v60 = vsel %vm50, %v45, 0.0
  %61 = vadd.xlane.f32.xlu0 %v60
  %v62 = vpop.xlane.xlu0 %61
  %v63 = vsel %vm50, %v46, 0.0
  %64 = vadd.xlane.f32.xlu0 %v63
  %v65 = vpop.xlane.xlu0 %64
  %v66 = vsel %vm50, %v47, 0.0
  %67 = vadd.xlane.f32.xlu0 %v66
  %v68 = vpop.xlane.xlu0 %67
  %v69 = vsel %vm50, %v48, 0.0
  %70 = vadd.xlane.f32.xlu0 %v69
  %v71 = vpop.xlane.xlu0 %70
  %v72 = vsel %vm50, %v49, 0.0
  %73 = vadd.xlane.f32.xlu0 %v72
  %v74 = vpop.xlane.xlu0 %73
  %v75 = vrcp.pop 32.0
  %v76 = vmul.f32 %v53, %v75
  %v77 = vmul.f32 %v56, %v75
  %v78 = vmul.f32 %v59, %v75
  %v79 = vmul.f32 %v62, %v75
  %v80 = vmul.f32 %v65, %v75
  %v81 = vmul.f32 %v68, %v75
  %v82 = vmul.f32 %v71, %v75
  %v83 = vmul.f32 %v74, %v75
  %v84 = vmul.f32 %v42, %v42
  %v85 = vmul.f32 %v43, %v43
  %v86 = vmul.f32 %v44, %v44
  %v87 = vmul.f32 %v45, %v45
  %v88 = vmul.f32 %v46, %v46
  %v89 = vmul.f32 %v47, %v47
  %v90 = vmul.f32 %v48, %v48
  %v91 = vmul.f32 %v49, %v49
  %v92 = vsel %vm50, %v84, 0.0
  %93 = vadd.xlane.f32.xlu0 %v92
  %v94 = vpop.xlane.xlu0 %93
  %v95 = vsel %vm50, %v85, 0.0
  %96 = vadd.xlane.f32.xlu0 %v95
  %v97 = vpop.xlane.xlu0 %96
  %v98 = vsel %vm50, %v86, 0.0
  %99 = vadd.xlane.f32.xlu0 %v98
  %v100 = vpop.xlane.xlu0 %99
  %v101 = vsel %vm50, %v87, 0.0
  %102 = vadd.xlane.f32.xlu0 %v101
  %v103 = vpop.xlane.xlu0 %102
  %v104 = vsel %vm50, %v88, 0.0
  %105 = vadd.xlane.f32.xlu0 %v104
  %v106 = vpop.xlane.xlu0 %105
  %v107 = vsel %vm50, %v89, 0.0
  %108 = vadd.xlane.f32.xlu0 %v107
  %v109 = vpop.xlane.xlu0 %108
  %v110 = vsel %vm50, %v90, 0.0
  %111 = vadd.xlane.f32.xlu0 %v110
  %v112 = vpop.xlane.xlu0 %111
  %v113 = vsel %vm50, %v91, 0.0
  %114 = vadd.xlane.f32.xlu0 %v113
  %v115 = vpop.xlane.xlu0 %114
  %v116 = vmul.f32 %v94, %v75
  %v117 = vmul.f32 %v97, %v75
  %v118 = vmul.f32 %v100, %v75
  %v119 = vmul.f32 %v103, %v75
  %v120 = vmul.f32 %v106, %v75
  %v121 = vmul.f32 %v109, %v75
  %v122 = vmul.f32 %v112, %v75
  %v123 = vmul.f32 %v115, %v75
  %v124 = vsub.f32 %v42, %v76
  %v125 = vsub.f32 %v43, %v77
  %v126 = vsub.f32 %v44, %v78
  %v127 = vsub.f32 %v45, %v79
  %v128 = vsub.f32 %v46, %v80
  %v129 = vsub.f32 %v47, %v81
  %v130 = vsub.f32 %v48, %v82
  %v131 = vsub.f32 %v49, %v83
  %v132 = vmul.f32 %v76, %v76
  %v133 = vmul.f32 %v77, %v77
  %v134 = vmul.f32 %v78, %v78
  %v135 = vmul.f32 %v79, %v79
  %v136 = vmul.f32 %v80, %v80
  %v137 = vmul.f32 %v81, %v81
  %v138 = vmul.f32 %v82, %v82
  %v139 = vmul.f32 %v83, %v83
  %v140 = vsub.f32 %v116, %v132
  %v141 = vsub.f32 %v117, %v133
  %v142 = vsub.f32 %v118, %v134
  %v143 = vsub.f32 %v119, %v135
  %v144 = vsub.f32 %v120, %v136
  %v145 = vsub.f32 %v121, %v137
  %v146 = vsub.f32 %v122, %v138
  %v147 = vsub.f32 %v123, %v139
  %v148 = vadd.f32 %v140, 1e-05
  %v149 = vadd.f32 %v141, 1e-05
  %v150 = vadd.f32 %v142, 1e-05
  %v151 = vadd.f32 %v143, 1e-05
  %v152 = vadd.f32 %v144, 1e-05
  %v153 = vadd.f32 %v145, 1e-05
  %v154 = vadd.f32 %v146, 1e-05
  %v155 = vadd.f32 %v147, 1e-05
  %v156 = vrsqrt.pop %v148
  %v157 = vrsqrt.pop %v149
  %v158 = vrsqrt.pop %v150
  %v159 = vrsqrt.pop %v151
  %v160 = vrsqrt.pop %v152
  %v161 = vrsqrt.pop %v153
  %v162 = vrsqrt.pop %v154
  %v163 = vrsqrt.pop %v155
  %v164 = vmul.f32 %v124, %v156
  %v165 = vmul.f32 %v125, %v157
  %v166 = vmul.f32 %v126, %v158
  %v167 = vmul.f32 %v127, %v159
  %v168 = vmul.f32 %v128, %v160
  %v169 = vmul.f32 %v129, %v161
  %v170 = vmul.f32 %v130, %v162
  %v171 = vmul.f32 %v131, %v163
  %v172 = vld [vmem:[%s1] sm:$0x1]
  %v174 = vlaneseq
  %v175 = vshrl.u32 %v174, 7
  %v176 = vsub.s32 0, %v175
  %v177 = vrot.slane %v172, %v176
  %v179 = vmul.f32 %v164, %v177
  %v180 = vmul.f32 %v165, %v177
  %v181 = vmul.f32 %v166, %v177
  %v182 = vmul.f32 %v167, %v177
  %v183 = vmul.f32 %v168, %v177
  %v184 = vmul.f32 %v169, %v177
  %v185 = vmul.f32 %v170, %v177
  %v186 = vmul.f32 %v171, %v177
  %v187 = vld [vmem:[%s2] sm:$0x1]
  %v189 = vlaneseq
  %v190 = vshrl.u32 %v189, 7
  %v191 = vsub.s32 0, %v190
  %v192 = vrot.slane %v187, %v191
  %v194 = vadd.f32 %v179, %v192
  %v195 = vadd.f32 %v180, %v192
  %v196 = vadd.f32 %v181, %v192
  %v197 = vadd.f32 %v182, %v192
  %v198 = vadd.f32 %v183, %v192
  %v199 = vadd.f32 %v184, %v192
  %v200 = vadd.f32 %v185, %v192
  %v201 = vadd.f32 %v186, %v192
  %v202 = vpack.c.bf16 %v195, %v194
  %v203 = vpack.c.bf16 %v197, %v196
  %v204 = vpack.c.bf16 %v199, %v198
  %v205 = vpack.c.bf16 %v201, %v200
  %v206 = vld [vmem:[%s3] sm:$0xf]
  %v207 = vld [vmem:[%s3 + $0x4] sm:$0xf]
  %v208 = vld [vmem:[%s3 + $0x8] sm:$0xf]
  %v209 = vld [vmem:[%s3 + $0xc] sm:$0xf]
  %v214 = vunpack.c.l.b16 %v206
  %v215 = vunpack.c.l.b16 %v207
  %v216 = vunpack.c.l.b16 %v208
  %v217 = vunpack.c.l.b16 %v209
  %v218 = vpack.c.b16 %v215, %v214
  %v219 = vpack.c.b16 %v217, %v216
  %v223 = vsel %vm50, %v202, 0
  %v226 = vsel %vm50, %v203, 0
  %v229 = vsel %vm50, %v204, 0
  %v232 = vsel %vm50, %v205, 0
  %234 = vmatprep.subr.bf16.mxu0 0
  %235 = vmatpush1.bf16.msra.mxu0 0
  %236 = vmatprep.subr.bf16.mxu0 0
  %237 = vmatpush1.bf16.msra.mxu0 0
  %238 = vmatprep.subr.bf16.mxu0 0
  %239 = vmatpush1.bf16.msra.mxu0 0
  %240 = vmatprep.subr.bf16.mxu0 0
  %241 = vmatpush1.bf16.msra.mxu0 0
  %242 = vmatprep.subr.bf16.mxu0 0
  %243 = vmatpush1.bf16.msra.mxu0 0
  %244 = vmatprep.subr.bf16.mxu0 0
  %245 = vmatpush1.bf16.msra.mxu0 0
  %246 = vmatprep.subr.bf16.mxu0 0
  %247 = vmatpush1.bf16.msra.mxu0 %v219
  %248 = vmatprep.subr.bf16.mxu0 0
  %249 = vmatpush1.bf16.msra.mxu0 %v218
  %250 = vmatprep.subr.bf16.mxu0 0
  %251 = vmatpush2.bf16.msra.mxu0 0
  %252 = vmatprep.subr.bf16.mxu0 0
  %253 = vmatpush2.bf16.msra.mxu0 0
  %254 = vmatprep.subr.bf16.mxu0 0
  %255 = vmatpush2.bf16.msra.mxu0 0
  %256 = vmatprep.subr.bf16.mxu0 0
  %257 = vmatpush2.bf16.msra.mxu0 0
  %258 = vmatprep.subr.bf16.mxu0 0
  %259 = vmatpush2.bf16.msra.mxu0 0
  %260 = vmatprep.subr.bf16.mxu0 0
  %261 = vmatpush2.bf16.msra.mxu0 0
  %262 = vmatprep.subr.bf16.mxu0 0
  %263 = vmatpush2.bf16.msra.mxu0 0
  %264 = vmatprep.subr.bf16.mxu0 0
  %265 = vmatpush2.bf16.msra.mxu0 0
  %266 = vmatprep.mubr.bf16.mxu0 0
  %267 = vmatmul.mubr.bf16.gmra.mxu0 %v223
  %v268 = vpop.f32.mrf.mxu0
  %v269 = vadd.f32 0.0, %v268
  %v270 = vpop.f32.mrf.mxu0
  %v271 = vpop.f32.mrf.mxu0
  %v272 = vadd.f32 0.0, %v271
  %v273 = vpop.f32.mrf.mxu0
  %274 = vmatprep.mubr.bf16.mxu0 0
  %275 = vmatmul.mubr.bf16.gmra.mxu0 %v226
  %v276 = vpop.f32.mrf.mxu0
  %v277 = vadd.f32 0.0, %v276
  %v278 = vpop.f32.mrf.mxu0
  %v279 = vpop.f32.mrf.mxu0
  %v280 = vadd.f32 0.0, %v279
  %v281 = vpop.f32.mrf.mxu0
  %282 = vmatprep.mubr.bf16.mxu0 0
  %283 = vmatmul.mubr.bf16.gmra.mxu0 %v229
  %v284 = vpop.f32.mrf.mxu0
  %v285 = vadd.f32 0.0, %v284
  %v286 = vpop.f32.mrf.mxu0
  %v287 = vpop.f32.mrf.mxu0
  %v288 = vadd.f32 0.0, %v287
  %v289 = vpop.f32.mrf.mxu0
  %290 = vmatprep.mubr.bf16.mxu0 0
  %291 = vmatmul.mubr.bf16.gmra.mxu0 %v232
  %v292 = vpop.f32.mrf.mxu0
  %v293 = vadd.f32 0.0, %v292
  %v294 = vpop.f32.mrf.mxu0
  %v295 = vpop.f32.mrf.mxu0
  %v296 = vadd.f32 0.0, %v295
  %v297 = vpop.f32.mrf.mxu0
  %298 = vdwg.mxu0
  %v299 = vmul.f32 %v269, 0.35355338
  %v300 = vmul.f32 %v272, 0.35355338
  %v301 = vmul.f32 %v277, 0.35355338
  %v302 = vmul.f32 %v280, 0.35355338
  %v303 = vmul.f32 %v285, 0.35355338
  %v304 = vmul.f32 %v288, 0.35355338
  %v305 = vmul.f32 %v293, 0.35355338
  %v306 = vmul.f32 %v296, 0.35355338
  %311 = vrot.lane.b32.xlu0 %v299, 120
  %v312 = vpop.permute.xlu0 %311
  %313 = vrot.lane.b32.xlu0 %v300, 120
  %v314 = vpop.permute.xlu0 %313
  %315 = vrot.lane.b32.xlu0 %v301, 120
  %v316 = vpop.permute.xlu0 %315
  %317 = vrot.lane.b32.xlu0 %v302, 120
  %v318 = vpop.permute.xlu0 %317
  %323 = vrot.lane.b32.xlu0 %v299, 112
  %v324 = vpop.permute.xlu0 %323
  %325 = vrot.lane.b32.xlu0 %v300, 112
  %v326 = vpop.permute.xlu0 %325
  %327 = vrot.lane.b32.xlu0 %v301, 112
  %v328 = vpop.permute.xlu0 %327
  %329 = vrot.lane.b32.xlu0 %v302, 112
  %v330 = vpop.permute.xlu0 %329
  %335 = vrot.lane.b32.xlu0 %v299, 104
  %v336 = vpop.permute.xlu0 %335
  %337 = vrot.lane.b32.xlu0 %v300, 104
  %v338 = vpop.permute.xlu0 %337
  %339 = vrot.lane.b32.xlu0 %v301, 104
  %v340 = vpop.permute.xlu0 %339
  %341 = vrot.lane.b32.xlu0 %v302, 104
  %v342 = vpop.permute.xlu0 %341
  %351 = vrot.lane.b32.xlu0 %v303, 120
  %v352 = vpop.permute.xlu0 %351
  %353 = vrot.lane.b32.xlu0 %v304, 120
  %v354 = vpop.permute.xlu0 %353
  %355 = vrot.lane.b32.xlu0 %v305, 120
  %v356 = vpop.permute.xlu0 %355
  %357 = vrot.lane.b32.xlu0 %v306, 120
  %v358 = vpop.permute.xlu0 %357
  %363 = vrot.lane.b32.xlu0 %v303, 112
  %v364 = vpop.permute.xlu0 %363
  %365 = vrot.lane.b32.xlu0 %v304, 112
  %v366 = vpop.permute.xlu0 %365
  %367 = vrot.lane.b32.xlu0 %v305, 112
  %v368 = vpop.permute.xlu0 %367
  %369 = vrot.lane.b32.xlu0 %v306, 112
  %v370 = vpop.permute.xlu0 %369
  %375 = vrot.lane.b32.xlu0 %v303, 104
  %v376 = vpop.permute.xlu0 %375
  %377 = vrot.lane.b32.xlu0 %v304, 104
  %v378 = vpop.permute.xlu0 %377
  %379 = vrot.lane.b32.xlu0 %v305, 104
  %v380 = vpop.permute.xlu0 %379
  %381 = vrot.lane.b32.xlu0 %v306, 104
  %v382 = vpop.permute.xlu0 %381
  %v387 = vpack.c.bf16 %v300, %v299
  %v388 = vpack.c.bf16 %v302, %v301
  %v389 = vpack.c.bf16 %v314, %v312
  %v390 = vpack.c.bf16 %v318, %v316
  %v391 = vpack.c.bf16 %v326, %v324
  %v392 = vpack.c.bf16 %v330, %v328
  %v393 = vpack.c.bf16 %v338, %v336
  %v394 = vpack.c.bf16 %v342, %v340
  %v395 = vpack.c.bf16 %v304, %v303
  %v396 = vpack.c.bf16 %v306, %v305
  %v397 = vpack.c.bf16 %v354, %v352
  %v398 = vpack.c.bf16 %v358, %v356
  %v399 = vpack.c.bf16 %v366, %v364
  %v400 = vpack.c.bf16 %v370, %v368
  %v401 = vpack.c.bf16 %v378, %v376
  %v402 = vpack.c.bf16 %v382, %v380
  %407 = vrot.lane.b32.xlu0 %v269, 120
  %v408 = vpop.permute.xlu0 %407
  %409 = vrot.lane.b32.xlu0 %v272, 120
  %v410 = vpop.permute.xlu0 %409
  %411 = vrot.lane.b32.xlu0 %v277, 120
  %v412 = vpop.permute.xlu0 %411
  %413 = vrot.lane.b32.xlu0 %v280, 120
  %v414 = vpop.permute.xlu0 %413
  %419 = vrot.lane.b32.xlu0 %v269, 112
  %v420 = vpop.permute.xlu0 %419
  %421 = vrot.lane.b32.xlu0 %v272, 112
  %v422 = vpop.permute.xlu0 %421
  %423 = vrot.lane.b32.xlu0 %v277, 112
  %v424 = vpop.permute.xlu0 %423
  %425 = vrot.lane.b32.xlu0 %v280, 112
  %v426 = vpop.permute.xlu0 %425
  %431 = vrot.lane.b32.xlu0 %v269, 104
  %v432 = vpop.permute.xlu0 %431
  %433 = vrot.lane.b32.xlu0 %v272, 104
  %v434 = vpop.permute.xlu0 %433
  %435 = vrot.lane.b32.xlu0 %v277, 104
  %v436 = vpop.permute.xlu0 %435
  %437 = vrot.lane.b32.xlu0 %v280, 104
  %v438 = vpop.permute.xlu0 %437
  %447 = vrot.lane.b32.xlu0 %v285, 120
  %v448 = vpop.permute.xlu0 %447
  %449 = vrot.lane.b32.xlu0 %v288, 120
  %v450 = vpop.permute.xlu0 %449
  %451 = vrot.lane.b32.xlu0 %v293, 120
  %v452 = vpop.permute.xlu0 %451
  %453 = vrot.lane.b32.xlu0 %v296, 120
  %v454 = vpop.permute.xlu0 %453
  %459 = vrot.lane.b32.xlu0 %v285, 112
  %v460 = vpop.permute.xlu0 %459
  %461 = vrot.lane.b32.xlu0 %v288, 112
  %v462 = vpop.permute.xlu0 %461
  %463 = vrot.lane.b32.xlu0 %v293, 112
  %v464 = vpop.permute.xlu0 %463
  %465 = vrot.lane.b32.xlu0 %v296, 112
  %v466 = vpop.permute.xlu0 %465
  %471 = vrot.lane.b32.xlu0 %v285, 104
  %v472 = vpop.permute.xlu0 %471
  %473 = vrot.lane.b32.xlu0 %v288, 104
  %v474 = vpop.permute.xlu0 %473
  %475 = vrot.lane.b32.xlu0 %v293, 104
  %v476 = vpop.permute.xlu0 %475
  %477 = vrot.lane.b32.xlu0 %v296, 104
  %v478 = vpop.permute.xlu0 %477
  %v483 = vpack.c.bf16 %v272, %v269
  %v484 = vpack.c.bf16 %v280, %v277
  %v485 = vpack.c.bf16 %v410, %v408
  %v486 = vpack.c.bf16 %v414, %v412
  %v487 = vpack.c.bf16 %v422, %v420
  %v488 = vpack.c.bf16 %v426, %v424
  %v489 = vpack.c.bf16 %v434, %v432
  %v490 = vpack.c.bf16 %v438, %v436
  %v491 = vpack.c.bf16 %v288, %v285
  %v492 = vpack.c.bf16 %v296, %v293
  %v493 = vpack.c.bf16 %v450, %v448
  %v494 = vpack.c.bf16 %v454, %v452
  %v495 = vpack.c.bf16 %v462, %v460
  %v496 = vpack.c.bf16 %v466, %v464
  %v497 = vpack.c.bf16 %v474, %v472
  %v498 = vpack.c.bf16 %v478, %v476
  %v499 = vlaneseq
  %v500 = vshrl.u32 %v499, 7
  %v501 = vadd.s32 %v500, 8
  %v502 = vadd.s32 %v500, 16
  %v503 = vadd.s32 %v500, 24
  %v504 = vlaneseq
  %v505 = vand.u32 %v504, 127
  %vm506 = vcmp.le.s32.totalorder %v505, %v500
  %vm507 = vcmp.le.s32.totalorder %v505, %v501
  %vm508 = vcmp.le.s32.totalorder %v505, %v502
  %vm509 = vcmp.le.s32.totalorder %v505, %v503
  %v510 = vsel %vm506, 0.0, -1e+30
  %v511 = vsel %vm507, 0.0, -1e+30
  %v512 = vsel %vm508, 0.0, -1e+30
  %v513 = vsel %vm509, 0.0, -1e+30
  %516 = vrot.lane.b32.xlu0 %v483, 96
  %v517 = vpop.permute.xlu0 %516
  %518 = vrot.lane.b32.xlu0 %v484, 96
  %v519 = vpop.permute.xlu0 %518
  %vm520 = vcmask 64512
  %v522 = vsel %vm520, %v387, 0
  %v525 = vsel %vm520, %v388, 0
  %v528 = vsel %vm520, %v517, 0
  %v531 = vsel %vm520, %v519, 0
  %533 = vmatprep.subr.bf16.mxu0 0
  %534 = vmatpush1.bf16.xpose.msra.mxu0 0
  %535 = vmatprep.subr.bf16.mxu0 0
  %536 = vmatpush1.bf16.xpose.msra.mxu0 0
  %537 = vmatprep.subr.bf16.mxu0 0
  %538 = vmatpush1.bf16.xpose.msra.mxu0 0
  %539 = vmatprep.subr.bf16.mxu0 0
  %540 = vmatpush1.bf16.xpose.msra.mxu0 0
  %541 = vmatprep.subr.bf16.mxu0 0
  %542 = vmatpush1.bf16.xpose.msra.mxu0 0
  %543 = vmatprep.subr.bf16.mxu0 0
  %544 = vmatpush1.bf16.xpose.msra.mxu0 0
  %545 = vmatprep.subr.bf16.mxu0 0
  %546 = vmatpush1.bf16.xpose.msra.mxu0 %v531
  %547 = vmatprep.subr.bf16.mxu0 0
  %548 = vmatpush1.bf16.xpose.msra.mxu0 %v528
  %549 = vmatprep.subr.bf16.mxu0 0
  %550 = vmatpush2.bf16.xpose.msra.mxu0 0
  %551 = vmatprep.subr.bf16.mxu0 0
  %552 = vmatpush2.bf16.xpose.msra.mxu0 0
  %553 = vmatprep.subr.bf16.mxu0 0
  %554 = vmatpush2.bf16.xpose.msra.mxu0 0
  %555 = vmatprep.subr.bf16.mxu0 0
  %556 = vmatpush2.bf16.xpose.msra.mxu0 0
  %557 = vmatprep.subr.bf16.mxu0 0
  %558 = vmatpush2.bf16.xpose.msra.mxu0 0
  %559 = vmatprep.subr.bf16.mxu0 0
  %560 = vmatpush2.bf16.xpose.msra.mxu0 0
  %561 = vmatprep.subr.bf16.mxu0 0
  %562 = vmatpush2.bf16.xpose.msra.mxu0 0
  %563 = vmatprep.subr.bf16.mxu0 0
  %564 = vmatpush2.bf16.xpose.msra.mxu0 0
  %565 = vmatprep.mubr.bf16.mxu0 0
  %566 = vmatmul.mubr.bf16.gmra.mxu0 %v522
  %v567 = vpop.f32.mrf.mxu0
  %v568 = vadd.f32 %v510, %v567
  %v569 = vpop.f32.mrf.mxu0
  %v570 = vpop.f32.mrf.mxu0
  %v571 = vadd.f32 %v511, %v570
  %v572 = vpop.f32.mrf.mxu0
  %573 = vmatprep.mubr.bf16.mxu0 0
  %574 = vmatmul.mubr.bf16.gmra.mxu0 %v525
  %v575 = vpop.f32.mrf.mxu0
  %v576 = vadd.f32 %v512, %v575
  %v577 = vpop.f32.mrf.mxu0
  %v578 = vpop.f32.mrf.mxu0
  %v579 = vadd.f32 %v513, %v578
  %v580 = vpop.f32.mrf.mxu0
  %581 = vdwg.mxu0
  %584 = vrot.lane.b32.xlu0 %v485, 96
  %v585 = vpop.permute.xlu0 %584
  %586 = vrot.lane.b32.xlu0 %v486, 96
  %v587 = vpop.permute.xlu0 %586
  %v589 = vsel %vm520, %v389, 0
  %v592 = vsel %vm520, %v390, 0
  %v595 = vsel %vm520, %v585, 0
  %v598 = vsel %vm520, %v587, 0
  %600 = vmatprep.subr.bf16.mxu0 0
  %601 = vmatpush1.bf16.xpose.msra.mxu0 0
  %602 = vmatprep.subr.bf16.mxu0 0
  %603 = vmatpush1.bf16.xpose.msra.mxu0 0
  %604 = vmatprep.subr.bf16.mxu0 0
  %605 = vmatpush1.bf16.xpose.msra.mxu0 0
  %606 = vmatprep.subr.bf16.mxu0 0
  %607 = vmatpush1.bf16.xpose.msra.mxu0 0
  %608 = vmatprep.subr.bf16.mxu0 0
  %609 = vmatpush1.bf16.xpose.msra.mxu0 0
  %610 = vmatprep.subr.bf16.mxu0 0
  %611 = vmatpush1.bf16.xpose.msra.mxu0 0
  %612 = vmatprep.subr.bf16.mxu0 0
  %613 = vmatpush1.bf16.xpose.msra.mxu0 %v598
  %614 = vmatprep.subr.bf16.mxu0 0
  %615 = vmatpush1.bf16.xpose.msra.mxu0 %v595
  %616 = vmatprep.subr.bf16.mxu0 0
  %617 = vmatpush2.bf16.xpose.msra.mxu0 0
  %618 = vmatprep.subr.bf16.mxu0 0
  %619 = vmatpush2.bf16.xpose.msra.mxu0 0
  %620 = vmatprep.subr.bf16.mxu0 0
  %621 = vmatpush2.bf16.xpose.msra.mxu0 0
  %622 = vmatprep.subr.bf16.mxu0 0
  %623 = vmatpush2.bf16.xpose.msra.mxu0 0
  %624 = vmatprep.subr.bf16.mxu0 0
  %625 = vmatpush2.bf16.xpose.msra.mxu0 0
  %626 = vmatprep.subr.bf16.mxu0 0
  %627 = vmatpush2.bf16.xpose.msra.mxu0 0
  %628 = vmatprep.subr.bf16.mxu0 0
  %629 = vmatpush2.bf16.xpose.msra.mxu0 0
  %630 = vmatprep.subr.bf16.mxu0 0
  %631 = vmatpush2.bf16.xpose.msra.mxu0 0
  %632 = vmatprep.mubr.bf16.mxu0 0
  %633 = vmatmul.mubr.bf16.gmra.mxu0 %v589
  %v634 = vpop.f32.mrf.mxu0
  %v635 = vadd.f32 %v510, %v634
  %v636 = vpop.f32.mrf.mxu0
  %v637 = vpop.f32.mrf.mxu0
  %v638 = vadd.f32 %v511, %v637
  %v639 = vpop.f32.mrf.mxu0
  %640 = vmatprep.mubr.bf16.mxu0 0
  %641 = vmatmul.mubr.bf16.gmra.mxu0 %v592
  %v642 = vpop.f32.mrf.mxu0
  %v643 = vadd.f32 %v512, %v642
  %v644 = vpop.f32.mrf.mxu0
  %v645 = vpop.f32.mrf.mxu0
  %v646 = vadd.f32 %v513, %v645
  %v647 = vpop.f32.mrf.mxu0
  %648 = vdwg.mxu0
  %651 = vrot.lane.b32.xlu0 %v487, 96
  %v652 = vpop.permute.xlu0 %651
  %653 = vrot.lane.b32.xlu0 %v488, 96
  %v654 = vpop.permute.xlu0 %653
  %v656 = vsel %vm520, %v391, 0
  %v659 = vsel %vm520, %v392, 0
  %v662 = vsel %vm520, %v652, 0
  %v665 = vsel %vm520, %v654, 0
  %667 = vmatprep.subr.bf16.mxu0 0
  %668 = vmatpush1.bf16.xpose.msra.mxu0 0
  %669 = vmatprep.subr.bf16.mxu0 0
  %670 = vmatpush1.bf16.xpose.msra.mxu0 0
  %671 = vmatprep.subr.bf16.mxu0 0
  %672 = vmatpush1.bf16.xpose.msra.mxu0 0
  %673 = vmatprep.subr.bf16.mxu0 0
  %674 = vmatpush1.bf16.xpose.msra.mxu0 0
  %675 = vmatprep.subr.bf16.mxu0 0
  %676 = vmatpush1.bf16.xpose.msra.mxu0 0
  %677 = vmatprep.subr.bf16.mxu0 0
  %678 = vmatpush1.bf16.xpose.msra.mxu0 0
  %679 = vmatprep.subr.bf16.mxu0 0
  %680 = vmatpush1.bf16.xpose.msra.mxu0 %v665
  %681 = vmatprep.subr.bf16.mxu0 0
  %682 = vmatpush1.bf16.xpose.msra.mxu0 %v662
  %683 = vmatprep.subr.bf16.mxu0 0
  %684 = vmatpush2.bf16.xpose.msra.mxu0 0
  %685 = vmatprep.subr.bf16.mxu0 0
  %686 = vmatpush2.bf16.xpose.msra.mxu0 0
  %687 = vmatprep.subr.bf16.mxu0 0
  %688 = vmatpush2.bf16.xpose.msra.mxu0 0
  %689 = vmatprep.subr.bf16.mxu0 0
  %690 = vmatpush2.bf16.xpose.msra.mxu0 0
  %691 = vmatprep.subr.bf16.mxu0 0
  %692 = vmatpush2.bf16.xpose.msra.mxu0 0
  %693 = vmatprep.subr.bf16.mxu0 0
  %694 = vmatpush2.bf16.xpose.msra.mxu0 0
  %695 = vmatprep.subr.bf16.mxu0 0
  %696 = vmatpush2.bf16.xpose.msra.mxu0 0
  %697 = vmatprep.subr.bf16.mxu0 0
  %698 = vmatpush2.bf16.xpose.msra.mxu0 0
  %699 = vmatprep.mubr.bf16.mxu0 0
  %700 = vmatmul.mubr.bf16.gmra.mxu0 %v656
  %v701 = vpop.f32.mrf.mxu0
  %v702 = vadd.f32 %v510, %v701
  %v703 = vpop.f32.mrf.mxu0
  %v704 = vpop.f32.mrf.mxu0
  %v705 = vadd.f32 %v511, %v704
  %v706 = vpop.f32.mrf.mxu0
  %707 = vmatprep.mubr.bf16.mxu0 0
  %708 = vmatmul.mubr.bf16.gmra.mxu0 %v659
  %v709 = vpop.f32.mrf.mxu0
  %v710 = vadd.f32 %v512, %v709
  %v711 = vpop.f32.mrf.mxu0
  %v712 = vpop.f32.mrf.mxu0
  %v713 = vadd.f32 %v513, %v712
  %v714 = vpop.f32.mrf.mxu0
  %715 = vdwg.mxu0
  %718 = vrot.lane.b32.xlu0 %v489, 96
  %v719 = vpop.permute.xlu0 %718
  %720 = vrot.lane.b32.xlu0 %v490, 96
  %v721 = vpop.permute.xlu0 %720
  %v723 = vsel %vm520, %v393, 0
  %v726 = vsel %vm520, %v394, 0
  %v729 = vsel %vm520, %v719, 0
  %v732 = vsel %vm520, %v721, 0
  %734 = vmatprep.subr.bf16.mxu0 0
  %735 = vmatpush1.bf16.xpose.msra.mxu0 0
  %736 = vmatprep.subr.bf16.mxu0 0
  %737 = vmatpush1.bf16.xpose.msra.mxu0 0
  %738 = vmatprep.subr.bf16.mxu0 0
  %739 = vmatpush1.bf16.xpose.msra.mxu0 0
  %740 = vmatprep.subr.bf16.mxu0 0
  %741 = vmatpush1.bf16.xpose.msra.mxu0 0
  %742 = vmatprep.subr.bf16.mxu0 0
  %743 = vmatpush1.bf16.xpose.msra.mxu0 0
  %744 = vmatprep.subr.bf16.mxu0 0
  %745 = vmatpush1.bf16.xpose.msra.mxu0 0
  %746 = vmatprep.subr.bf16.mxu0 0
  %747 = vmatpush1.bf16.xpose.msra.mxu0 %v732
  %748 = vmatprep.subr.bf16.mxu0 0
  %749 = vmatpush1.bf16.xpose.msra.mxu0 %v729
  %750 = vmatprep.subr.bf16.mxu0 0
  %751 = vmatpush2.bf16.xpose.msra.mxu0 0
  %752 = vmatprep.subr.bf16.mxu0 0
  %753 = vmatpush2.bf16.xpose.msra.mxu0 0
  %754 = vmatprep.subr.bf16.mxu0 0
  %755 = vmatpush2.bf16.xpose.msra.mxu0 0
  %756 = vmatprep.subr.bf16.mxu0 0
  %757 = vmatpush2.bf16.xpose.msra.mxu0 0
  %758 = vmatprep.subr.bf16.mxu0 0
  %759 = vmatpush2.bf16.xpose.msra.mxu0 0
  %760 = vmatprep.subr.bf16.mxu0 0
  %761 = vmatpush2.bf16.xpose.msra.mxu0 0
  %762 = vmatprep.subr.bf16.mxu0 0
  %763 = vmatpush2.bf16.xpose.msra.mxu0 0
  %764 = vmatprep.subr.bf16.mxu0 0
  %765 = vmatpush2.bf16.xpose.msra.mxu0 0
  %766 = vmatprep.mubr.bf16.mxu0 0
  %767 = vmatmul.mubr.bf16.gmra.mxu0 %v723
  %v768 = vpop.f32.mrf.mxu0
  %v769 = vadd.f32 %v510, %v768
  %v770 = vpop.f32.mrf.mxu0
  %v771 = vpop.f32.mrf.mxu0
  %v772 = vadd.f32 %v511, %v771
  %v773 = vpop.f32.mrf.mxu0
  %774 = vmatprep.mubr.bf16.mxu0 0
  %775 = vmatmul.mubr.bf16.gmra.mxu0 %v726
  %v776 = vpop.f32.mrf.mxu0
  %v777 = vadd.f32 %v512, %v776
  %v778 = vpop.f32.mrf.mxu0
  %v779 = vpop.f32.mrf.mxu0
  %v780 = vadd.f32 %v513, %v779
  %v781 = vpop.f32.mrf.mxu0
  %782 = vdwg.mxu0
  %785 = vrot.lane.b32.xlu0 %v491, 96
  %v786 = vpop.permute.xlu0 %785
  %787 = vrot.lane.b32.xlu0 %v492, 96
  %v788 = vpop.permute.xlu0 %787
  %v790 = vsel %vm520, %v395, 0
  %v793 = vsel %vm520, %v396, 0
  %v796 = vsel %vm520, %v786, 0
  %v799 = vsel %vm520, %v788, 0
  %801 = vmatprep.subr.bf16.mxu0 0
  %802 = vmatpush1.bf16.xpose.msra.mxu0 0
  %803 = vmatprep.subr.bf16.mxu0 0
  %804 = vmatpush1.bf16.xpose.msra.mxu0 0
  %805 = vmatprep.subr.bf16.mxu0 0
  %806 = vmatpush1.bf16.xpose.msra.mxu0 0
  %807 = vmatprep.subr.bf16.mxu0 0
  %808 = vmatpush1.bf16.xpose.msra.mxu0 0
  %809 = vmatprep.subr.bf16.mxu0 0
  %810 = vmatpush1.bf16.xpose.msra.mxu0 0
  %811 = vmatprep.subr.bf16.mxu0 0
  %812 = vmatpush1.bf16.xpose.msra.mxu0 0
  %813 = vmatprep.subr.bf16.mxu0 0
  %814 = vmatpush1.bf16.xpose.msra.mxu0 %v799
  %815 = vmatprep.subr.bf16.mxu0 0
  %816 = vmatpush1.bf16.xpose.msra.mxu0 %v796
  %817 = vmatprep.subr.bf16.mxu0 0
  %818 = vmatpush2.bf16.xpose.msra.mxu0 0
  %819 = vmatprep.subr.bf16.mxu0 0
  %820 = vmatpush2.bf16.xpose.msra.mxu0 0
  %821 = vmatprep.subr.bf16.mxu0 0
  %822 = vmatpush2.bf16.xpose.msra.mxu0 0
  %823 = vmatprep.subr.bf16.mxu0 0
  %824 = vmatpush2.bf16.xpose.msra.mxu0 0
  %825 = vmatprep.subr.bf16.mxu0 0
  %826 = vmatpush2.bf16.xpose.msra.mxu0 0
  %827 = vmatprep.subr.bf16.mxu0 0
  %828 = vmatpush2.bf16.xpose.msra.mxu0 0
  %829 = vmatprep.subr.bf16.mxu0 0
  %830 = vmatpush2.bf16.xpose.msra.mxu0 0
  %831 = vmatprep.subr.bf16.mxu0 0
  %832 = vmatpush2.bf16.xpose.msra.mxu0 0
  %833 = vmatprep.mubr.bf16.mxu0 0
  %834 = vmatmul.mubr.bf16.gmra.mxu0 %v790
  %v835 = vpop.f32.mrf.mxu0
  %v836 = vadd.f32 %v510, %v835
  %v837 = vpop.f32.mrf.mxu0
  %v838 = vpop.f32.mrf.mxu0
  %v839 = vadd.f32 %v511, %v838
  %v840 = vpop.f32.mrf.mxu0
  %841 = vmatprep.mubr.bf16.mxu0 0
  %842 = vmatmul.mubr.bf16.gmra.mxu0 %v793
  %v843 = vpop.f32.mrf.mxu0
  %v844 = vadd.f32 %v512, %v843
  %v845 = vpop.f32.mrf.mxu0
  %v846 = vpop.f32.mrf.mxu0
  %v847 = vadd.f32 %v513, %v846
  %v848 = vpop.f32.mrf.mxu0
  %849 = vdwg.mxu0
  %852 = vrot.lane.b32.xlu0 %v493, 96
  %v853 = vpop.permute.xlu0 %852
  %854 = vrot.lane.b32.xlu0 %v494, 96
  %v855 = vpop.permute.xlu0 %854
  %v857 = vsel %vm520, %v397, 0
  %v860 = vsel %vm520, %v398, 0
  %v863 = vsel %vm520, %v853, 0
  %v866 = vsel %vm520, %v855, 0
  %868 = vmatprep.subr.bf16.mxu0 0
  %869 = vmatpush1.bf16.xpose.msra.mxu0 0
  %870 = vmatprep.subr.bf16.mxu0 0
  %871 = vmatpush1.bf16.xpose.msra.mxu0 0
  %872 = vmatprep.subr.bf16.mxu0 0
  %873 = vmatpush1.bf16.xpose.msra.mxu0 0
  %874 = vmatprep.subr.bf16.mxu0 0
  %875 = vmatpush1.bf16.xpose.msra.mxu0 0
  %876 = vmatprep.subr.bf16.mxu0 0
  %877 = vmatpush1.bf16.xpose.msra.mxu0 0
  %878 = vmatprep.subr.bf16.mxu0 0
  %879 = vmatpush1.bf16.xpose.msra.mxu0 0
  %880 = vmatprep.subr.bf16.mxu0 0
  %881 = vmatpush1.bf16.xpose.msra.mxu0 %v866
  %882 = vmatprep.subr.bf16.mxu0 0
  %883 = vmatpush1.bf16.xpose.msra.mxu0 %v863
  %884 = vmatprep.subr.bf16.mxu0 0
  %885 = vmatpush2.bf16.xpose.msra.mxu0 0
  %886 = vmatprep.subr.bf16.mxu0 0
  %887 = vmatpush2.bf16.xpose.msra.mxu0 0
  %888 = vmatprep.subr.bf16.mxu0 0
  %889 = vmatpush2.bf16.xpose.msra.mxu0 0
  %890 = vmatprep.subr.bf16.mxu0 0
  %891 = vmatpush2.bf16.xpose.msra.mxu0 0
  %892 = vmatprep.subr.bf16.mxu0 0
  %893 = vmatpush2.bf16.xpose.msra.mxu0 0
  %894 = vmatprep.subr.bf16.mxu0 0
  %895 = vmatpush2.bf16.xpose.msra.mxu0 0
  %896 = vmatprep.subr.bf16.mxu0 0
  %897 = vmatpush2.bf16.xpose.msra.mxu0 0
  %898 = vmatprep.subr.bf16.mxu0 0
  %899 = vmatpush2.bf16.xpose.msra.mxu0 0
  %900 = vmatprep.mubr.bf16.mxu0 0
  %901 = vmatmul.mubr.bf16.gmra.mxu0 %v857
  %v902 = vpop.f32.mrf.mxu0
  %v903 = vadd.f32 %v510, %v902
  %v904 = vpop.f32.mrf.mxu0
  %v905 = vpop.f32.mrf.mxu0
  %v906 = vadd.f32 %v511, %v905
  %v907 = vpop.f32.mrf.mxu0
  %908 = vmatprep.mubr.bf16.mxu0 0
  %909 = vmatmul.mubr.bf16.gmra.mxu0 %v860
  %v910 = vpop.f32.mrf.mxu0
  %v911 = vadd.f32 %v512, %v910
  %v912 = vpop.f32.mrf.mxu0
  %v913 = vpop.f32.mrf.mxu0
  %v914 = vadd.f32 %v513, %v913
  %v915 = vpop.f32.mrf.mxu0
  %916 = vdwg.mxu0
  %919 = vrot.lane.b32.xlu0 %v495, 96
  %v920 = vpop.permute.xlu0 %919
  %921 = vrot.lane.b32.xlu0 %v496, 96
  %v922 = vpop.permute.xlu0 %921
  %v924 = vsel %vm520, %v399, 0
  %v927 = vsel %vm520, %v400, 0
  %v930 = vsel %vm520, %v920, 0
  %v933 = vsel %vm520, %v922, 0
  %935 = vmatprep.subr.bf16.mxu0 0
  %936 = vmatpush1.bf16.xpose.msra.mxu0 0
  %937 = vmatprep.subr.bf16.mxu0 0
  %938 = vmatpush1.bf16.xpose.msra.mxu0 0
  %939 = vmatprep.subr.bf16.mxu0 0
  %940 = vmatpush1.bf16.xpose.msra.mxu0 0
  %941 = vmatprep.subr.bf16.mxu0 0
  %942 = vmatpush1.bf16.xpose.msra.mxu0 0
  %943 = vmatprep.subr.bf16.mxu0 0
  %944 = vmatpush1.bf16.xpose.msra.mxu0 0
  %945 = vmatprep.subr.bf16.mxu0 0
  %946 = vmatpush1.bf16.xpose.msra.mxu0 0
  %947 = vmatprep.subr.bf16.mxu0 0
  %948 = vmatpush1.bf16.xpose.msra.mxu0 %v933
  %949 = vmatprep.subr.bf16.mxu0 0
  %950 = vmatpush1.bf16.xpose.msra.mxu0 %v930
  %951 = vmatprep.subr.bf16.mxu0 0
  %952 = vmatpush2.bf16.xpose.msra.mxu0 0
  %953 = vmatprep.subr.bf16.mxu0 0
  %954 = vmatpush2.bf16.xpose.msra.mxu0 0
  %955 = vmatprep.subr.bf16.mxu0 0
  %956 = vmatpush2.bf16.xpose.msra.mxu0 0
  %957 = vmatprep.subr.bf16.mxu0 0
  %958 = vmatpush2.bf16.xpose.msra.mxu0 0
  %959 = vmatprep.subr.bf16.mxu0 0
  %960 = vmatpush2.bf16.xpose.msra.mxu0 0
  %961 = vmatprep.subr.bf16.mxu0 0
  %962 = vmatpush2.bf16.xpose.msra.mxu0 0
  %963 = vmatprep.subr.bf16.mxu0 0
  %964 = vmatpush2.bf16.xpose.msra.mxu0 0
  %965 = vmatprep.subr.bf16.mxu0 0
  %966 = vmatpush2.bf16.xpose.msra.mxu0 0
  %967 = vmatprep.mubr.bf16.mxu0 0
  %968 = vmatmul.mubr.bf16.gmra.mxu0 %v924
  %v969 = vpop.f32.mrf.mxu0
  %v970 = vadd.f32 %v510, %v969
  %v971 = vpop.f32.mrf.mxu0
  %v972 = vpop.f32.mrf.mxu0
  %v973 = vadd.f32 %v511, %v972
  %v974 = vpop.f32.mrf.mxu0
  %975 = vmatprep.mubr.bf16.mxu0 0
  %976 = vmatmul.mubr.bf16.gmra.mxu0 %v927
  %v977 = vpop.f32.mrf.mxu0
  %v978 = vadd.f32 %v512, %v977
  %v979 = vpop.f32.mrf.mxu0
  %v980 = vpop.f32.mrf.mxu0
  %v981 = vadd.f32 %v513, %v980
  %v982 = vpop.f32.mrf.mxu0
  %983 = vdwg.mxu0
  %986 = vrot.lane.b32.xlu0 %v497, 96
  %v987 = vpop.permute.xlu0 %986
  %988 = vrot.lane.b32.xlu0 %v498, 96
  %v989 = vpop.permute.xlu0 %988
  %v991 = vsel %vm520, %v401, 0
  %v994 = vsel %vm520, %v402, 0
  %v997 = vsel %vm520, %v987, 0
  %v1000 = vsel %vm520, %v989, 0
  %1002 = vmatprep.subr.bf16.mxu0 0
  %1003 = vmatpush1.bf16.xpose.msra.mxu0 0
  %1004 = vmatprep.subr.bf16.mxu0 0
  %1005 = vmatpush1.bf16.xpose.msra.mxu0 0
  %1006 = vmatprep.subr.bf16.mxu0 0
  %1007 = vmatpush1.bf16.xpose.msra.mxu0 0
  %1008 = vmatprep.subr.bf16.mxu0 0
  %1009 = vmatpush1.bf16.xpose.msra.mxu0 0
  %1010 = vmatprep.subr.bf16.mxu0 0
  %1011 = vmatpush1.bf16.xpose.msra.mxu0 0
  %1012 = vmatprep.subr.bf16.mxu0 0
  %1013 = vmatpush1.bf16.xpose.msra.mxu0 0
  %1014 = vmatprep.subr.bf16.mxu0 0
  %1015 = vmatpush1.bf16.xpose.msra.mxu0 %v1000
  %1016 = vmatprep.subr.bf16.mxu0 0
  %1017 = vmatpush1.bf16.xpose.msra.mxu0 %v997
  %1018 = vmatprep.subr.bf16.mxu0 0
  %1019 = vmatpush2.bf16.xpose.msra.mxu0 0
  %1020 = vmatprep.subr.bf16.mxu0 0
  %1021 = vmatpush2.bf16.xpose.msra.mxu0 0
  %1022 = vmatprep.subr.bf16.mxu0 0
  %1023 = vmatpush2.bf16.xpose.msra.mxu0 0
  %1024 = vmatprep.subr.bf16.mxu0 0
  %1025 = vmatpush2.bf16.xpose.msra.mxu0 0
  %1026 = vmatprep.subr.bf16.mxu0 0
  %1027 = vmatpush2.bf16.xpose.msra.mxu0 0
  %1028 = vmatprep.subr.bf16.mxu0 0
  %1029 = vmatpush2.bf16.xpose.msra.mxu0 0
  %1030 = vmatprep.subr.bf16.mxu0 0
  %1031 = vmatpush2.bf16.xpose.msra.mxu0 0
  %1032 = vmatprep.subr.bf16.mxu0 0
  %1033 = vmatpush2.bf16.xpose.msra.mxu0 0
  %1034 = vmatprep.mubr.bf16.mxu0 0
  %1035 = vmatmul.mubr.bf16.gmra.mxu0 %v991
  %v1036 = vpop.f32.mrf.mxu0
  %v1037 = vadd.f32 %v510, %v1036
  %v1038 = vpop.f32.mrf.mxu0
  %v1039 = vpop.f32.mrf.mxu0
  %v1040 = vadd.f32 %v511, %v1039
  %v1041 = vpop.f32.mrf.mxu0
  %1042 = vmatprep.mubr.bf16.mxu0 0
  %1043 = vmatmul.mubr.bf16.gmra.mxu0 %v994
  %v1044 = vpop.f32.mrf.mxu0
  %v1045 = vadd.f32 %v512, %v1044
  %v1046 = vpop.f32.mrf.mxu0
  %v1047 = vpop.f32.mrf.mxu0
  %v1048 = vadd.f32 %v513, %v1047
  %v1049 = vpop.f32.mrf.mxu0
  %1050 = vdwg.mxu0
  %v1051 = vsel %vm50, %v568, -inf
  %1052 = vmax.xlane.f32.xlu0 %v1051
  %v1053 = vpop.xlane.xlu0 %1052
  %v1054 = vsel %vm50, %v571, -inf
  %1055 = vmax.xlane.f32.xlu0 %v1054
  %v1056 = vpop.xlane.xlu0 %1055
  %v1057 = vsel %vm50, %v576, -inf
  %1058 = vmax.xlane.f32.xlu0 %v1057
  %v1059 = vpop.xlane.xlu0 %1058
  %v1060 = vsel %vm50, %v579, -inf
  %1061 = vmax.xlane.f32.xlu0 %v1060
  %v1062 = vpop.xlane.xlu0 %1061
  %v1063 = vsel %vm50, %v635, -inf
  %1064 = vmax.xlane.f32.xlu0 %v1063
  %v1065 = vpop.xlane.xlu0 %1064
  %v1066 = vsel %vm50, %v638, -inf
  %1067 = vmax.xlane.f32.xlu0 %v1066
  %v1068 = vpop.xlane.xlu0 %1067
  %v1069 = vsel %vm50, %v643, -inf
  %1070 = vmax.xlane.f32.xlu0 %v1069
  %v1071 = vpop.xlane.xlu0 %1070
  %v1072 = vsel %vm50, %v646, -inf
  %1073 = vmax.xlane.f32.xlu0 %v1072
  %v1074 = vpop.xlane.xlu0 %1073
  %v1075 = vsel %vm50, %v702, -inf
  %1076 = vmax.xlane.f32.xlu0 %v1075
  %v1077 = vpop.xlane.xlu0 %1076
  %v1078 = vsel %vm50, %v705, -inf
  %1079 = vmax.xlane.f32.xlu0 %v1078
  %v1080 = vpop.xlane.xlu0 %1079
  %v1081 = vsel %vm50, %v710, -inf
  %1082 = vmax.xlane.f32.xlu0 %v1081
  %v1083 = vpop.xlane.xlu0 %1082
  %v1084 = vsel %vm50, %v713, -inf
  %1085 = vmax.xlane.f32.xlu0 %v1084
  %v1086 = vpop.xlane.xlu0 %1085
  %v1087 = vsel %vm50, %v769, -inf
  %1088 = vmax.xlane.f32.xlu0 %v1087
  %v1089 = vpop.xlane.xlu0 %1088
  %v1090 = vsel %vm50, %v772, -inf
  %1091 = vmax.xlane.f32.xlu0 %v1090
  %v1092 = vpop.xlane.xlu0 %1091
  %v1093 = vsel %vm50, %v777, -inf
  %1094 = vmax.xlane.f32.xlu0 %v1093
  %v1095 = vpop.xlane.xlu0 %1094
  %v1096 = vsel %vm50, %v780, -inf
  %1097 = vmax.xlane.f32.xlu0 %v1096
  %v1098 = vpop.xlane.xlu0 %1097
  %v1099 = vsel %vm50, %v836, -inf
  %1100 = vmax.xlane.f32.xlu0 %v1099
  %v1101 = vpop.xlane.xlu0 %1100
  %v1102 = vsel %vm50, %v839, -inf
  %1103 = vmax.xlane.f32.xlu0 %v1102
  %v1104 = vpop.xlane.xlu0 %1103
  %v1105 = vsel %vm50, %v844, -inf
  %1106 = vmax.xlane.f32.xlu0 %v1105
  %v1107 = vpop.xlane.xlu0 %1106
  %v1108 = vsel %vm50, %v847, -inf
  %1109 = vmax.xlane.f32.xlu0 %v1108
  %v1110 = vpop.xlane.xlu0 %1109
  %v1111 = vsel %vm50, %v903, -inf
  %1112 = vmax.xlane.f32.xlu0 %v1111
  %v1113 = vpop.xlane.xlu0 %1112
  %v1114 = vsel %vm50, %v906, -inf
  %1115 = vmax.xlane.f32.xlu0 %v1114
  %v1116 = vpop.xlane.xlu0 %1115
  %v1117 = vsel %vm50, %v911, -inf
  %1118 = vmax.xlane.f32.xlu0 %v1117
  %v1119 = vpop.xlane.xlu0 %1118
  %v1120 = vsel %vm50, %v914, -inf
  %1121 = vmax.xlane.f32.xlu0 %v1120
  %v1122 = vpop.xlane.xlu0 %1121
  %v1123 = vsel %vm50, %v970, -inf
  %1124 = vmax.xlane.f32.xlu0 %v1123
  %v1125 = vpop.xlane.xlu0 %1124
  %v1126 = vsel %vm50, %v973, -inf
  %1127 = vmax.xlane.f32.xlu0 %v1126
  %v1128 = vpop.xlane.xlu0 %1127
  %v1129 = vsel %vm50, %v978, -inf
  %1130 = vmax.xlane.f32.xlu0 %v1129
  %v1131 = vpop.xlane.xlu0 %1130
  %v1132 = vsel %vm50, %v981, -inf
  %1133 = vmax.xlane.f32.xlu0 %v1132
  %v1134 = vpop.xlane.xlu0 %1133
  %v1135 = vsel %vm50, %v1037, -inf
  %1136 = vmax.xlane.f32.xlu0 %v1135
  %v1137 = vpop.xlane.xlu0 %1136
  %v1138 = vsel %vm50, %v1040, -inf
  %1139 = vmax.xlane.f32.xlu0 %v1138
  %v1140 = vpop.xlane.xlu0 %1139
  %v1141 = vsel %vm50, %v1045, -inf
  %1142 = vmax.xlane.f32.xlu0 %v1141
  %v1143 = vpop.xlane.xlu0 %1142
  %v1144 = vsel %vm50, %v1048, -inf
  %1145 = vmax.xlane.f32.xlu0 %v1144
  %v1146 = vpop.xlane.xlu0 %1145
  %v1147 = vsub.f32 %v568, %v1053
  %v1148 = vsub.f32 %v571, %v1056
  %v1149 = vsub.f32 %v576, %v1059
  %v1150 = vsub.f32 %v579, %v1062
  %v1151 = vsub.f32 %v635, %v1065
  %v1152 = vsub.f32 %v638, %v1068
  %v1153 = vsub.f32 %v643, %v1071
  %v1154 = vsub.f32 %v646, %v1074
  %v1155 = vsub.f32 %v702, %v1077
  %v1156 = vsub.f32 %v705, %v1080
  %v1157 = vsub.f32 %v710, %v1083
  %v1158 = vsub.f32 %v713, %v1086
  %v1159 = vsub.f32 %v769, %v1089
  %v1160 = vsub.f32 %v772, %v1092
  %v1161 = vsub.f32 %v777, %v1095
  %v1162 = vsub.f32 %v780, %v1098
  %v1163 = vsub.f32 %v836, %v1101
  %v1164 = vsub.f32 %v839, %v1104
  %v1165 = vsub.f32 %v844, %v1107
  %v1166 = vsub.f32 %v847, %v1110
  %v1167 = vsub.f32 %v903, %v1113
  %v1168 = vsub.f32 %v906, %v1116
  %v1169 = vsub.f32 %v911, %v1119
  %v1170 = vsub.f32 %v914, %v1122
  %v1171 = vsub.f32 %v970, %v1125
  %v1172 = vsub.f32 %v973, %v1128
  %v1173 = vsub.f32 %v978, %v1131
  %v1174 = vsub.f32 %v981, %v1134
  %v1175 = vsub.f32 %v1037, %v1137
  %v1176 = vsub.f32 %v1040, %v1140
  %v1177 = vsub.f32 %v1045, %v1143
  %v1178 = vsub.f32 %v1048, %v1146
  %v1179 = vmul.f32 %v1147, 1.442695
  %v1180 = vpow.pop %v1179
  %v1181 = vmul.f32 %v1148, 1.442695
  %v1182 = vpow.pop %v1181
  %v1183 = vmul.f32 %v1149, 1.442695
  %v1184 = vpow.pop %v1183
  %v1185 = vmul.f32 %v1150, 1.442695
  %v1186 = vpow.pop %v1185
  %v1187 = vmul.f32 %v1151, 1.442695
  %v1188 = vpow.pop %v1187
  %v1189 = vmul.f32 %v1152, 1.442695
  %v1190 = vpow.pop %v1189
  %v1191 = vmul.f32 %v1153, 1.442695
  %v1192 = vpow.pop %v1191
  %v1193 = vmul.f32 %v1154, 1.442695
  %v1194 = vpow.pop %v1193
  %v1195 = vmul.f32 %v1155, 1.442695
  %v1196 = vpow.pop %v1195
  %v1197 = vmul.f32 %v1156, 1.442695
  %v1198 = vpow.pop %v1197
  %v1199 = vmul.f32 %v1157, 1.442695
  %v1200 = vpow.pop %v1199
  %v1201 = vmul.f32 %v1158, 1.442695
  %v1202 = vpow.pop %v1201
  %v1203 = vmul.f32 %v1159, 1.442695
  %v1204 = vpow.pop %v1203
  %v1205 = vmul.f32 %v1160, 1.442695
  %v1206 = vpow.pop %v1205
  %v1207 = vmul.f32 %v1161, 1.442695
  %v1208 = vpow.pop %v1207
  %v1209 = vmul.f32 %v1162, 1.442695
  %v1210 = vpow.pop %v1209
  %v1211 = vmul.f32 %v1163, 1.442695
  %v1212 = vpow.pop %v1211
  %v1213 = vmul.f32 %v1164, 1.442695
  %v1214 = vpow.pop %v1213
  %v1215 = vmul.f32 %v1165, 1.442695
  %v1216 = vpow.pop %v1215
  %v1217 = vmul.f32 %v1166, 1.442695
  %v1218 = vpow.pop %v1217
  %v1219 = vmul.f32 %v1167, 1.442695
  %v1220 = vpow.pop %v1219
  %v1221 = vmul.f32 %v1168, 1.442695
  %v1222 = vpow.pop %v1221
  %v1223 = vmul.f32 %v1169, 1.442695
  %v1224 = vpow.pop %v1223
  %v1225 = vmul.f32 %v1170, 1.442695
  %v1226 = vpow.pop %v1225
  %v1227 = vmul.f32 %v1171, 1.442695
  %v1228 = vpow.pop %v1227
  %v1229 = vmul.f32 %v1172, 1.442695
  %v1230 = vpow.pop %v1229
  %v1231 = vmul.f32 %v1173, 1.442695
  %v1232 = vpow.pop %v1231
  %v1233 = vmul.f32 %v1174, 1.442695
  %v1234 = vpow.pop %v1233
  %v1235 = vmul.f32 %v1175, 1.442695
  %v1236 = vpow.pop %v1235
  %v1237 = vmul.f32 %v1176, 1.442695
  %v1238 = vpow.pop %v1237
  %v1239 = vmul.f32 %v1177, 1.442695
  %v1240 = vpow.pop %v1239
  %v1241 = vmul.f32 %v1178, 1.442695
  %v1242 = vpow.pop %v1241
  %v1243 = vsel %vm50, %v1180, 0.0
  %1244 = vadd.xlane.f32.xlu0 %v1243
  %v1245 = vpop.xlane.xlu0 %1244
  %v1246 = vsel %vm50, %v1182, 0.0
  %1247 = vadd.xlane.f32.xlu0 %v1246
  %v1248 = vpop.xlane.xlu0 %1247
  %v1249 = vsel %vm50, %v1184, 0.0
  %1250 = vadd.xlane.f32.xlu0 %v1249
  %v1251 = vpop.xlane.xlu0 %1250
  %v1252 = vsel %vm50, %v1186, 0.0
  %1253 = vadd.xlane.f32.xlu0 %v1252
  %v1254 = vpop.xlane.xlu0 %1253
  %v1255 = vsel %vm50, %v1188, 0.0
  %1256 = vadd.xlane.f32.xlu0 %v1255
  %v1257 = vpop.xlane.xlu0 %1256
  %v1258 = vsel %vm50, %v1190, 0.0
  %1259 = vadd.xlane.f32.xlu0 %v1258
  %v1260 = vpop.xlane.xlu0 %1259
  %v1261 = vsel %vm50, %v1192, 0.0
  %1262 = vadd.xlane.f32.xlu0 %v1261
  %v1263 = vpop.xlane.xlu0 %1262
  %v1264 = vsel %vm50, %v1194, 0.0
  %1265 = vadd.xlane.f32.xlu0 %v1264
  %v1266 = vpop.xlane.xlu0 %1265
  %v1267 = vsel %vm50, %v1196, 0.0
  %1268 = vadd.xlane.f32.xlu0 %v1267
  %v1269 = vpop.xlane.xlu0 %1268
  %v1270 = vsel %vm50, %v1198, 0.0
  %1271 = vadd.xlane.f32.xlu0 %v1270
  %v1272 = vpop.xlane.xlu0 %1271
  %v1273 = vsel %vm50, %v1200, 0.0
  %1274 = vadd.xlane.f32.xlu0 %v1273
  %v1275 = vpop.xlane.xlu0 %1274
  %v1276 = vsel %vm50, %v1202, 0.0
  %1277 = vadd.xlane.f32.xlu0 %v1276
  %v1278 = vpop.xlane.xlu0 %1277
  %v1279 = vsel %vm50, %v1204, 0.0
  %1280 = vadd.xlane.f32.xlu0 %v1279
  %v1281 = vpop.xlane.xlu0 %1280
  %v1282 = vsel %vm50, %v1206, 0.0
  %1283 = vadd.xlane.f32.xlu0 %v1282
  %v1284 = vpop.xlane.xlu0 %1283
  %v1285 = vsel %vm50, %v1208, 0.0
  %1286 = vadd.xlane.f32.xlu0 %v1285
  %v1287 = vpop.xlane.xlu0 %1286
  %v1288 = vsel %vm50, %v1210, 0.0
  %1289 = vadd.xlane.f32.xlu0 %v1288
  %v1290 = vpop.xlane.xlu0 %1289
  %v1291 = vsel %vm50, %v1212, 0.0
  %1292 = vadd.xlane.f32.xlu0 %v1291
  %v1293 = vpop.xlane.xlu0 %1292
  %v1294 = vsel %vm50, %v1214, 0.0
  %1295 = vadd.xlane.f32.xlu0 %v1294
  %v1296 = vpop.xlane.xlu0 %1295
  %v1297 = vsel %vm50, %v1216, 0.0
  %1298 = vadd.xlane.f32.xlu0 %v1297
  %v1299 = vpop.xlane.xlu0 %1298
  %v1300 = vsel %vm50, %v1218, 0.0
  %1301 = vadd.xlane.f32.xlu0 %v1300
  %v1302 = vpop.xlane.xlu0 %1301
  %v1303 = vsel %vm50, %v1220, 0.0
  %1304 = vadd.xlane.f32.xlu0 %v1303
  %v1305 = vpop.xlane.xlu0 %1304
  %v1306 = vsel %vm50, %v1222, 0.0
  %1307 = vadd.xlane.f32.xlu0 %v1306
  %v1308 = vpop.xlane.xlu0 %1307
  %v1309 = vsel %vm50, %v1224, 0.0
  %1310 = vadd.xlane.f32.xlu0 %v1309
  %v1311 = vpop.xlane.xlu0 %1310
  %v1312 = vsel %vm50, %v1226, 0.0
  %1313 = vadd.xlane.f32.xlu0 %v1312
  %v1314 = vpop.xlane.xlu0 %1313
  %v1315 = vsel %vm50, %v1228, 0.0
  %1316 = vadd.xlane.f32.xlu0 %v1315
  %v1317 = vpop.xlane.xlu0 %1316
  %v1318 = vsel %vm50, %v1230, 0.0
  %1319 = vadd.xlane.f32.xlu0 %v1318
  %v1320 = vpop.xlane.xlu0 %1319
  %v1321 = vsel %vm50, %v1232, 0.0
  %1322 = vadd.xlane.f32.xlu0 %v1321
  %v1323 = vpop.xlane.xlu0 %1322
  %v1324 = vsel %vm50, %v1234, 0.0
  %1325 = vadd.xlane.f32.xlu0 %v1324
  %v1326 = vpop.xlane.xlu0 %1325
  %v1327 = vsel %vm50, %v1236, 0.0
  %1328 = vadd.xlane.f32.xlu0 %v1327
  %v1329 = vpop.xlane.xlu0 %1328
  %v1330 = vsel %vm50, %v1238, 0.0
  %1331 = vadd.xlane.f32.xlu0 %v1330
  %v1332 = vpop.xlane.xlu0 %1331
  %v1333 = vsel %vm50, %v1240, 0.0
  %1334 = vadd.xlane.f32.xlu0 %v1333
  %v1335 = vpop.xlane.xlu0 %1334
  %v1336 = vsel %vm50, %v1242, 0.0
  %1337 = vadd.xlane.f32.xlu0 %v1336
  %v1338 = vpop.xlane.xlu0 %1337
  %v1339 = vrcp.pop %v1245
  %v1340 = vrcp.pop %v1248
  %v1341 = vrcp.pop %v1251
  %v1342 = vrcp.pop %v1254
  %v1343 = vrcp.pop %v1257
  %v1344 = vrcp.pop %v1260
  %v1345 = vrcp.pop %v1263
  %v1346 = vrcp.pop %v1266
  %v1347 = vrcp.pop %v1269
  %v1348 = vrcp.pop %v1272
  %v1349 = vrcp.pop %v1275
  %v1350 = vrcp.pop %v1278
  %v1351 = vrcp.pop %v1281
  %v1352 = vrcp.pop %v1284
  %v1353 = vrcp.pop %v1287
  %v1354 = vrcp.pop %v1290
  %v1355 = vrcp.pop %v1293
  %v1356 = vrcp.pop %v1296
  %v1357 = vrcp.pop %v1299
  %v1358 = vrcp.pop %v1302
  %v1359 = vrcp.pop %v1305
  %v1360 = vrcp.pop %v1308
  %v1361 = vrcp.pop %v1311
  %v1362 = vrcp.pop %v1314
  %v1363 = vrcp.pop %v1317
  %v1364 = vrcp.pop %v1320
  %v1365 = vrcp.pop %v1323
  %v1366 = vrcp.pop %v1326
  %v1367 = vrcp.pop %v1329
  %v1368 = vrcp.pop %v1332
  %v1369 = vrcp.pop %v1335
  %v1370 = vrcp.pop %v1338
  %v1371 = vmul.f32 %v1180, %v1339
  %v1372 = vmul.f32 %v1182, %v1340
  %v1373 = vmul.f32 %v1184, %v1341
  %v1374 = vmul.f32 %v1186, %v1342
  %v1375 = vmul.f32 %v1188, %v1343
  %v1376 = vmul.f32 %v1190, %v1344
  %v1377 = vmul.f32 %v1192, %v1345
  %v1378 = vmul.f32 %v1194, %v1346
  %v1379 = vmul.f32 %v1196, %v1347
  %v1380 = vmul.f32 %v1198, %v1348
  %v1381 = vmul.f32 %v1200, %v1349
  %v1382 = vmul.f32 %v1202, %v1350
  %v1383 = vmul.f32 %v1204, %v1351
  %v1384 = vmul.f32 %v1206, %v1352
  %v1385 = vmul.f32 %v1208, %v1353
  %v1386 = vmul.f32 %v1210, %v1354
  %v1387 = vmul.f32 %v1212, %v1355
  %v1388 = vmul.f32 %v1214, %v1356
  %v1389 = vmul.f32 %v1216, %v1357
  %v1390 = vmul.f32 %v1218, %v1358
  %v1391 = vmul.f32 %v1220, %v1359
  %v1392 = vmul.f32 %v1222, %v1360
  %v1393 = vmul.f32 %v1224, %v1361
  %v1394 = vmul.f32 %v1226, %v1362
  %v1395 = vmul.f32 %v1228, %v1363
  %v1396 = vmul.f32 %v1230, %v1364
  %v1397 = vmul.f32 %v1232, %v1365
  %v1398 = vmul.f32 %v1234, %v1366
  %v1399 = vmul.f32 %v1236, %v1367
  %v1400 = vmul.f32 %v1238, %v1368
  %v1401 = vmul.f32 %v1240, %v1369
  %v1402 = vmul.f32 %v1242, %v1370
  %v1403 = vpack.c.bf16 %v1372, %v1371
  %v1404 = vpack.c.bf16 %v1374, %v1373
  %v1405 = vpack.c.bf16 %v1376, %v1375
  %v1406 = vpack.c.bf16 %v1378, %v1377
  %v1407 = vpack.c.bf16 %v1380, %v1379
  %v1408 = vpack.c.bf16 %v1382, %v1381
  %v1409 = vpack.c.bf16 %v1384, %v1383
  %v1410 = vpack.c.bf16 %v1386, %v1385
  %v1411 = vpack.c.bf16 %v1388, %v1387
  %v1412 = vpack.c.bf16 %v1390, %v1389
  %v1413 = vpack.c.bf16 %v1392, %v1391
  %v1414 = vpack.c.bf16 %v1394, %v1393
  %v1415 = vpack.c.bf16 %v1396, %v1395
  %v1416 = vpack.c.bf16 %v1398, %v1397
  %v1417 = vpack.c.bf16 %v1400, %v1399
  %v1418 = vpack.c.bf16 %v1402, %v1401
  %1419 = vrot.lane.b32.xlu0 %v483, 64
  %v1420 = vpop.permute.xlu0 %1419
  %1421 = vrot.lane.b32.xlu0 %v484, 64
  %v1422 = vpop.permute.xlu0 %1421
  %v1426 = vsel %vm50, %v1403, 0
  %v1429 = vsel %vm50, %v1404, 0
  %1431 = vmatprep.subr.bf16.mxu0 0
  %1432 = vmatpush1.bf16.msra.mxu0 0
  %1433 = vmatprep.subr.bf16.mxu0 0
  %1434 = vmatpush1.bf16.msra.mxu0 0
  %1435 = vmatprep.subr.bf16.mxu0 0
  %1436 = vmatpush1.bf16.msra.mxu0 0
  %1437 = vmatprep.subr.bf16.mxu0 0
  %1438 = vmatpush1.bf16.msra.mxu0 0
  %1439 = vmatprep.subr.bf16.mxu0 0
  %1440 = vmatpush1.bf16.msra.mxu0 0
  %1441 = vmatprep.subr.bf16.mxu0 0
  %1442 = vmatpush1.bf16.msra.mxu0 0
  %1443 = vmatprep.subr.bf16.mxu0 0
  %1444 = vmatpush1.bf16.msra.mxu0 %v1422
  %1445 = vmatprep.subr.bf16.mxu0 0
  %1446 = vmatpush1.bf16.msra.mxu0 %v1420
  %1447 = vmatprep.subr.bf16.mxu0 0
  %1448 = vmatpush2.bf16.msra.mxu0 0
  %1449 = vmatprep.subr.bf16.mxu0 0
  %1450 = vmatpush2.bf16.msra.mxu0 0
  %1451 = vmatprep.subr.bf16.mxu0 0
  %1452 = vmatpush2.bf16.msra.mxu0 0
  %1453 = vmatprep.subr.bf16.mxu0 0
  %1454 = vmatpush2.bf16.msra.mxu0 0
  %1455 = vmatprep.subr.bf16.mxu0 0
  %1456 = vmatpush2.bf16.msra.mxu0 0
  %1457 = vmatprep.subr.bf16.mxu0 0
  %1458 = vmatpush2.bf16.msra.mxu0 0
  %1459 = vmatprep.subr.bf16.mxu0 0
  %1460 = vmatpush2.bf16.msra.mxu0 0
  %1461 = vmatprep.subr.bf16.mxu0 0
  %1462 = vmatpush2.bf16.msra.mxu0 0
  %1463 = vmatprep.mubr.bf16.mxu0 0
  %1464 = vmatmul.mubr.bf16.gmra.mxu0 %v1426
  %v1465 = vpop.f32.mrf.mxu0
  %v1466 = vadd.f32 0.0, %v1465
  %v1467 = vpop.f32.mrf.mxu0
  %v1468 = vpop.f32.mrf.mxu0
  %v1469 = vadd.f32 0.0, %v1468
  %v1470 = vpop.f32.mrf.mxu0
  %1471 = vmatprep.mubr.bf16.mxu0 0
  %1472 = vmatmul.mubr.bf16.gmra.mxu0 %v1429
  %v1473 = vpop.f32.mrf.mxu0
  %v1474 = vadd.f32 0.0, %v1473
  %v1475 = vpop.f32.mrf.mxu0
  %v1476 = vpop.f32.mrf.mxu0
  %v1477 = vadd.f32 0.0, %v1476
  %v1478 = vpop.f32.mrf.mxu0
  %1479 = vdwg.mxu0
  %1480 = vrot.lane.b32.xlu0 %v485, 64
  %v1481 = vpop.permute.xlu0 %1480
  %1482 = vrot.lane.b32.xlu0 %v486, 64
  %v1483 = vpop.permute.xlu0 %1482
  %v1487 = vsel %vm50, %v1405, 0
  %v1490 = vsel %vm50, %v1406, 0
  %1492 = vmatprep.subr.bf16.mxu0 0
  %1493 = vmatpush1.bf16.msra.mxu0 0
  %1494 = vmatprep.subr.bf16.mxu0 0
  %1495 = vmatpush1.bf16.msra.mxu0 0
  %1496 = vmatprep.subr.bf16.mxu0 0
  %1497 = vmatpush1.bf16.msra.mxu0 0
  %1498 = vmatprep.subr.bf16.mxu0 0
  %1499 = vmatpush1.bf16.msra.mxu0 0
  %1500 = vmatprep.subr.bf16.mxu0 0
  %1501 = vmatpush1.bf16.msra.mxu0 0
  %1502 = vmatprep.subr.bf16.mxu0 0
  %1503 = vmatpush1.bf16.msra.mxu0 0
  %1504 = vmatprep.subr.bf16.mxu0 0
  %1505 = vmatpush1.bf16.msra.mxu0 %v1483
  %1506 = vmatprep.subr.bf16.mxu0 0
  %1507 = vmatpush1.bf16.msra.mxu0 %v1481
  %1508 = vmatprep.subr.bf16.mxu0 0
  %1509 = vmatpush2.bf16.msra.mxu0 0
  %1510 = vmatprep.subr.bf16.mxu0 0
  %1511 = vmatpush2.bf16.msra.mxu0 0
  %1512 = vmatprep.subr.bf16.mxu0 0
  %1513 = vmatpush2.bf16.msra.mxu0 0
  %1514 = vmatprep.subr.bf16.mxu0 0
  %1515 = vmatpush2.bf16.msra.mxu0 0
  %1516 = vmatprep.subr.bf16.mxu0 0
  %1517 = vmatpush2.bf16.msra.mxu0 0
  %1518 = vmatprep.subr.bf16.mxu0 0
  %1519 = vmatpush2.bf16.msra.mxu0 0
  %1520 = vmatprep.subr.bf16.mxu0 0
  %1521 = vmatpush2.bf16.msra.mxu0 0
  %1522 = vmatprep.subr.bf16.mxu0 0
  %1523 = vmatpush2.bf16.msra.mxu0 0
  %1524 = vmatprep.mubr.bf16.mxu0 0
  %1525 = vmatmul.mubr.bf16.gmra.mxu0 %v1487
  %v1526 = vpop.f32.mrf.mxu0
  %v1527 = vadd.f32 0.0, %v1526
  %v1528 = vpop.f32.mrf.mxu0
  %v1529 = vpop.f32.mrf.mxu0
  %v1530 = vadd.f32 0.0, %v1529
  %v1531 = vpop.f32.mrf.mxu0
  %1532 = vmatprep.mubr.bf16.mxu0 0
  %1533 = vmatmul.mubr.bf16.gmra.mxu0 %v1490
  %v1534 = vpop.f32.mrf.mxu0
  %v1535 = vadd.f32 0.0, %v1534
  %v1536 = vpop.f32.mrf.mxu0
  %v1537 = vpop.f32.mrf.mxu0
  %v1538 = vadd.f32 0.0, %v1537
  %v1539 = vpop.f32.mrf.mxu0
  %1540 = vdwg.mxu0
  %1541 = vrot.lane.b32.xlu0 %v487, 64
  %v1542 = vpop.permute.xlu0 %1541
  %1543 = vrot.lane.b32.xlu0 %v488, 64
  %v1544 = vpop.permute.xlu0 %1543
  %v1548 = vsel %vm50, %v1407, 0
  %v1551 = vsel %vm50, %v1408, 0
  %1553 = vmatprep.subr.bf16.mxu0 0
  %1554 = vmatpush1.bf16.msra.mxu0 0
  %1555 = vmatprep.subr.bf16.mxu0 0
  %1556 = vmatpush1.bf16.msra.mxu0 0
  %1557 = vmatprep.subr.bf16.mxu0 0
  %1558 = vmatpush1.bf16.msra.mxu0 0
  %1559 = vmatprep.subr.bf16.mxu0 0
  %1560 = vmatpush1.bf16.msra.mxu0 0
  %1561 = vmatprep.subr.bf16.mxu0 0
  %1562 = vmatpush1.bf16.msra.mxu0 0
  %1563 = vmatprep.subr.bf16.mxu0 0
  %1564 = vmatpush1.bf16.msra.mxu0 0
  %1565 = vmatprep.subr.bf16.mxu0 0
  %1566 = vmatpush1.bf16.msra.mxu0 %v1544
  %1567 = vmatprep.subr.bf16.mxu0 0
  %1568 = vmatpush1.bf16.msra.mxu0 %v1542
  %1569 = vmatprep.subr.bf16.mxu0 0
  %1570 = vmatpush2.bf16.msra.mxu0 0
  %1571 = vmatprep.subr.bf16.mxu0 0
  %1572 = vmatpush2.bf16.msra.mxu0 0
  %1573 = vmatprep.subr.bf16.mxu0 0
  %1574 = vmatpush2.bf16.msra.mxu0 0
  %1575 = vmatprep.subr.bf16.mxu0 0
  %1576 = vmatpush2.bf16.msra.mxu0 0
  %1577 = vmatprep.subr.bf16.mxu0 0
  %1578 = vmatpush2.bf16.msra.mxu0 0
  %1579 = vmatprep.subr.bf16.mxu0 0
  %1580 = vmatpush2.bf16.msra.mxu0 0
  %1581 = vmatprep.subr.bf16.mxu0 0
  %1582 = vmatpush2.bf16.msra.mxu0 0
  %1583 = vmatprep.subr.bf16.mxu0 0
  %1584 = vmatpush2.bf16.msra.mxu0 0
  %1585 = vmatprep.mubr.bf16.mxu0 0
  %1586 = vmatmul.mubr.bf16.gmra.mxu0 %v1548
  %v1587 = vpop.f32.mrf.mxu0
  %v1588 = vadd.f32 0.0, %v1587
  %v1589 = vpop.f32.mrf.mxu0
  %v1590 = vpop.f32.mrf.mxu0
  %v1591 = vadd.f32 0.0, %v1590
  %v1592 = vpop.f32.mrf.mxu0
  %1593 = vmatprep.mubr.bf16.mxu0 0
  %1594 = vmatmul.mubr.bf16.gmra.mxu0 %v1551
  %v1595 = vpop.f32.mrf.mxu0
  %v1596 = vadd.f32 0.0, %v1595
  %v1597 = vpop.f32.mrf.mxu0
  %v1598 = vpop.f32.mrf.mxu0
  %v1599 = vadd.f32 0.0, %v1598
  %v1600 = vpop.f32.mrf.mxu0
  %1601 = vdwg.mxu0
  %1602 = vrot.lane.b32.xlu0 %v489, 64
  %v1603 = vpop.permute.xlu0 %1602
  %1604 = vrot.lane.b32.xlu0 %v490, 64
  %v1605 = vpop.permute.xlu0 %1604
  %v1609 = vsel %vm50, %v1409, 0
  %v1612 = vsel %vm50, %v1410, 0
  %1614 = vmatprep.subr.bf16.mxu0 0
  %1615 = vmatpush1.bf16.msra.mxu0 0
  %1616 = vmatprep.subr.bf16.mxu0 0
  %1617 = vmatpush1.bf16.msra.mxu0 0
  %1618 = vmatprep.subr.bf16.mxu0 0
  %1619 = vmatpush1.bf16.msra.mxu0 0
  %1620 = vmatprep.subr.bf16.mxu0 0
  %1621 = vmatpush1.bf16.msra.mxu0 0
  %1622 = vmatprep.subr.bf16.mxu0 0
  %1623 = vmatpush1.bf16.msra.mxu0 0
  %1624 = vmatprep.subr.bf16.mxu0 0
  %1625 = vmatpush1.bf16.msra.mxu0 0
  %1626 = vmatprep.subr.bf16.mxu0 0
  %1627 = vmatpush1.bf16.msra.mxu0 %v1605
  %1628 = vmatprep.subr.bf16.mxu0 0
  %1629 = vmatpush1.bf16.msra.mxu0 %v1603
  %1630 = vmatprep.subr.bf16.mxu0 0
  %1631 = vmatpush2.bf16.msra.mxu0 0
  %1632 = vmatprep.subr.bf16.mxu0 0
  %1633 = vmatpush2.bf16.msra.mxu0 0
  %1634 = vmatprep.subr.bf16.mxu0 0
  %1635 = vmatpush2.bf16.msra.mxu0 0
  %1636 = vmatprep.subr.bf16.mxu0 0
  %1637 = vmatpush2.bf16.msra.mxu0 0
  %1638 = vmatprep.subr.bf16.mxu0 0
  %1639 = vmatpush2.bf16.msra.mxu0 0
  %1640 = vmatprep.subr.bf16.mxu0 0
  %1641 = vmatpush2.bf16.msra.mxu0 0
  %1642 = vmatprep.subr.bf16.mxu0 0
  %1643 = vmatpush2.bf16.msra.mxu0 0
  %1644 = vmatprep.subr.bf16.mxu0 0
  %1645 = vmatpush2.bf16.msra.mxu0 0
  %1646 = vmatprep.mubr.bf16.mxu0 0
  %1647 = vmatmul.mubr.bf16.gmra.mxu0 %v1609
  %v1648 = vpop.f32.mrf.mxu0
  %v1649 = vadd.f32 0.0, %v1648
  %v1650 = vpop.f32.mrf.mxu0
  %v1651 = vpop.f32.mrf.mxu0
  %v1652 = vadd.f32 0.0, %v1651
  %v1653 = vpop.f32.mrf.mxu0
  %1654 = vmatprep.mubr.bf16.mxu0 0
  %1655 = vmatmul.mubr.bf16.gmra.mxu0 %v1612
  %v1656 = vpop.f32.mrf.mxu0
  %v1657 = vadd.f32 0.0, %v1656
  %v1658 = vpop.f32.mrf.mxu0
  %v1659 = vpop.f32.mrf.mxu0
  %v1660 = vadd.f32 0.0, %v1659
  %v1661 = vpop.f32.mrf.mxu0
  %1662 = vdwg.mxu0
  %1663 = vrot.lane.b32.xlu0 %v491, 64
  %v1664 = vpop.permute.xlu0 %1663
  %1665 = vrot.lane.b32.xlu0 %v492, 64
  %v1666 = vpop.permute.xlu0 %1665
  %v1670 = vsel %vm50, %v1411, 0
  %v1673 = vsel %vm50, %v1412, 0
  %1675 = vmatprep.subr.bf16.mxu0 0
  %1676 = vmatpush1.bf16.msra.mxu0 0
  %1677 = vmatprep.subr.bf16.mxu0 0
  %1678 = vmatpush1.bf16.msra.mxu0 0
  %1679 = vmatprep.subr.bf16.mxu0 0
  %1680 = vmatpush1.bf16.msra.mxu0 0
  %1681 = vmatprep.subr.bf16.mxu0 0
  %1682 = vmatpush1.bf16.msra.mxu0 0
  %1683 = vmatprep.subr.bf16.mxu0 0
  %1684 = vmatpush1.bf16.msra.mxu0 0
  %1685 = vmatprep.subr.bf16.mxu0 0
  %1686 = vmatpush1.bf16.msra.mxu0 0
  %1687 = vmatprep.subr.bf16.mxu0 0
  %1688 = vmatpush1.bf16.msra.mxu0 %v1666
  %1689 = vmatprep.subr.bf16.mxu0 0
  %1690 = vmatpush1.bf16.msra.mxu0 %v1664
  %1691 = vmatprep.subr.bf16.mxu0 0
  %1692 = vmatpush2.bf16.msra.mxu0 0
  %1693 = vmatprep.subr.bf16.mxu0 0
  %1694 = vmatpush2.bf16.msra.mxu0 0
  %1695 = vmatprep.subr.bf16.mxu0 0
  %1696 = vmatpush2.bf16.msra.mxu0 0
  %1697 = vmatprep.subr.bf16.mxu0 0
  %1698 = vmatpush2.bf16.msra.mxu0 0
  %1699 = vmatprep.subr.bf16.mxu0 0
  %1700 = vmatpush2.bf16.msra.mxu0 0
  %1701 = vmatprep.subr.bf16.mxu0 0
  %1702 = vmatpush2.bf16.msra.mxu0 0
  %1703 = vmatprep.subr.bf16.mxu0 0
  %1704 = vmatpush2.bf16.msra.mxu0 0
  %1705 = vmatprep.subr.bf16.mxu0 0
  %1706 = vmatpush2.bf16.msra.mxu0 0
  %1707 = vmatprep.mubr.bf16.mxu0 0
  %1708 = vmatmul.mubr.bf16.gmra.mxu0 %v1670
  %v1709 = vpop.f32.mrf.mxu0
  %v1710 = vadd.f32 0.0, %v1709
  %v1711 = vpop.f32.mrf.mxu0
  %v1712 = vpop.f32.mrf.mxu0
  %v1713 = vadd.f32 0.0, %v1712
  %v1714 = vpop.f32.mrf.mxu0
  %1715 = vmatprep.mubr.bf16.mxu0 0
  %1716 = vmatmul.mubr.bf16.gmra.mxu0 %v1673
  %v1717 = vpop.f32.mrf.mxu0
  %v1718 = vadd.f32 0.0, %v1717
  %v1719 = vpop.f32.mrf.mxu0
  %v1720 = vpop.f32.mrf.mxu0
  %v1721 = vadd.f32 0.0, %v1720
  %v1722 = vpop.f32.mrf.mxu0
  %1723 = vdwg.mxu0
  %1724 = vrot.lane.b32.xlu0 %v493, 64
  %v1725 = vpop.permute.xlu0 %1724
  %1726 = vrot.lane.b32.xlu0 %v494, 64
  %v1727 = vpop.permute.xlu0 %1726
  %v1731 = vsel %vm50, %v1413, 0
  %v1734 = vsel %vm50, %v1414, 0
  %1736 = vmatprep.subr.bf16.mxu0 0
  %1737 = vmatpush1.bf16.msra.mxu0 0
  %1738 = vmatprep.subr.bf16.mxu0 0
  %1739 = vmatpush1.bf16.msra.mxu0 0
  %1740 = vmatprep.subr.bf16.mxu0 0
  %1741 = vmatpush1.bf16.msra.mxu0 0
  %1742 = vmatprep.subr.bf16.mxu0 0
  %1743 = vmatpush1.bf16.msra.mxu0 0
  %1744 = vmatprep.subr.bf16.mxu0 0
  %1745 = vmatpush1.bf16.msra.mxu0 0
  %1746 = vmatprep.subr.bf16.mxu0 0
  %1747 = vmatpush1.bf16.msra.mxu0 0
  %1748 = vmatprep.subr.bf16.mxu0 0
  %1749 = vmatpush1.bf16.msra.mxu0 %v1727
  %1750 = vmatprep.subr.bf16.mxu0 0
  %1751 = vmatpush1.bf16.msra.mxu0 %v1725
  %1752 = vmatprep.subr.bf16.mxu0 0
  %1753 = vmatpush2.bf16.msra.mxu0 0
  %1754 = vmatprep.subr.bf16.mxu0 0
  %1755 = vmatpush2.bf16.msra.mxu0 0
  %1756 = vmatprep.subr.bf16.mxu0 0
  %1757 = vmatpush2.bf16.msra.mxu0 0
  %1758 = vmatprep.subr.bf16.mxu0 0
  %1759 = vmatpush2.bf16.msra.mxu0 0
  %1760 = vmatprep.subr.bf16.mxu0 0
  %1761 = vmatpush2.bf16.msra.mxu0 0
  %1762 = vmatprep.subr.bf16.mxu0 0
  %1763 = vmatpush2.bf16.msra.mxu0 0
  %1764 = vmatprep.subr.bf16.mxu0 0
  %1765 = vmatpush2.bf16.msra.mxu0 0
  %1766 = vmatprep.subr.bf16.mxu0 0
  %1767 = vmatpush2.bf16.msra.mxu0 0
  %1768 = vmatprep.mubr.bf16.mxu0 0
  %1769 = vmatmul.mubr.bf16.gmra.mxu0 %v1731
  %v1770 = vpop.f32.mrf.mxu0
  %v1771 = vadd.f32 0.0, %v1770
  %v1772 = vpop.f32.mrf.mxu0
  %v1773 = vpop.f32.mrf.mxu0
  %v1774 = vadd.f32 0.0, %v1773
  %v1775 = vpop.f32.mrf.mxu0
  %1776 = vmatprep.mubr.bf16.mxu0 0
  %1777 = vmatmul.mubr.bf16.gmra.mxu0 %v1734
  %v1778 = vpop.f32.mrf.mxu0
  %v1779 = vadd.f32 0.0, %v1778
  %v1780 = vpop.f32.mrf.mxu0
  %v1781 = vpop.f32.mrf.mxu0
  %v1782 = vadd.f32 0.0, %v1781
  %v1783 = vpop.f32.mrf.mxu0
  %1784 = vdwg.mxu0
  %1785 = vrot.lane.b32.xlu0 %v495, 64
  %v1786 = vpop.permute.xlu0 %1785
  %1787 = vrot.lane.b32.xlu0 %v496, 64
  %v1788 = vpop.permute.xlu0 %1787
  %v1792 = vsel %vm50, %v1415, 0
  %v1795 = vsel %vm50, %v1416, 0
  %1797 = vmatprep.subr.bf16.mxu0 0
  %1798 = vmatpush1.bf16.msra.mxu0 0
  %1799 = vmatprep.subr.bf16.mxu0 0
  %1800 = vmatpush1.bf16.msra.mxu0 0
  %1801 = vmatprep.subr.bf16.mxu0 0
  %1802 = vmatpush1.bf16.msra.mxu0 0
  %1803 = vmatprep.subr.bf16.mxu0 0
  %1804 = vmatpush1.bf16.msra.mxu0 0
  %1805 = vmatprep.subr.bf16.mxu0 0
  %1806 = vmatpush1.bf16.msra.mxu0 0
  %1807 = vmatprep.subr.bf16.mxu0 0
  %1808 = vmatpush1.bf16.msra.mxu0 0
  %1809 = vmatprep.subr.bf16.mxu0 0
  %1810 = vmatpush1.bf16.msra.mxu0 %v1788
  %1811 = vmatprep.subr.bf16.mxu0 0
  %1812 = vmatpush1.bf16.msra.mxu0 %v1786
  %1813 = vmatprep.subr.bf16.mxu0 0
  %1814 = vmatpush2.bf16.msra.mxu0 0
  %1815 = vmatprep.subr.bf16.mxu0 0
  %1816 = vmatpush2.bf16.msra.mxu0 0
  %1817 = vmatprep.subr.bf16.mxu0 0
  %1818 = vmatpush2.bf16.msra.mxu0 0
  %1819 = vmatprep.subr.bf16.mxu0 0
  %1820 = vmatpush2.bf16.msra.mxu0 0
  %1821 = vmatprep.subr.bf16.mxu0 0
  %1822 = vmatpush2.bf16.msra.mxu0 0
  %1823 = vmatprep.subr.bf16.mxu0 0
  %1824 = vmatpush2.bf16.msra.mxu0 0
  %1825 = vmatprep.subr.bf16.mxu0 0
  %1826 = vmatpush2.bf16.msra.mxu0 0
  %1827 = vmatprep.subr.bf16.mxu0 0
  %1828 = vmatpush2.bf16.msra.mxu0 0
  %1829 = vmatprep.mubr.bf16.mxu0 0
  %1830 = vmatmul.mubr.bf16.gmra.mxu0 %v1792
  %v1831 = vpop.f32.mrf.mxu0
  %v1832 = vadd.f32 0.0, %v1831
  %v1833 = vpop.f32.mrf.mxu0
  %v1834 = vpop.f32.mrf.mxu0
  %v1835 = vadd.f32 0.0, %v1834
  %v1836 = vpop.f32.mrf.mxu0
  %1837 = vmatprep.mubr.bf16.mxu0 0
  %1838 = vmatmul.mubr.bf16.gmra.mxu0 %v1795
  %v1839 = vpop.f32.mrf.mxu0
  %v1840 = vadd.f32 0.0, %v1839
  %v1841 = vpop.f32.mrf.mxu0
  %v1842 = vpop.f32.mrf.mxu0
  %v1843 = vadd.f32 0.0, %v1842
  %v1844 = vpop.f32.mrf.mxu0
  %1845 = vdwg.mxu0
  %1846 = vrot.lane.b32.xlu0 %v497, 64
  %v1847 = vpop.permute.xlu0 %1846
  %1848 = vrot.lane.b32.xlu0 %v498, 64
  %v1849 = vpop.permute.xlu0 %1848
  %v1853 = vsel %vm50, %v1417, 0
  %v1856 = vsel %vm50, %v1418, 0
  %1858 = vmatprep.subr.bf16.mxu0 0
  %1859 = vmatpush1.bf16.msra.mxu0 0
  %1860 = vmatprep.subr.bf16.mxu0 0
  %1861 = vmatpush1.bf16.msra.mxu0 0
  %1862 = vmatprep.subr.bf16.mxu0 0
  %1863 = vmatpush1.bf16.msra.mxu0 0
  %1864 = vmatprep.subr.bf16.mxu0 0
  %1865 = vmatpush1.bf16.msra.mxu0 0
  %1866 = vmatprep.subr.bf16.mxu0 0
  %1867 = vmatpush1.bf16.msra.mxu0 0
  %1868 = vmatprep.subr.bf16.mxu0 0
  %1869 = vmatpush1.bf16.msra.mxu0 0
  %1870 = vmatprep.subr.bf16.mxu0 0
  %1871 = vmatpush1.bf16.msra.mxu0 %v1849
  %1872 = vmatprep.subr.bf16.mxu0 0
  %1873 = vmatpush1.bf16.msra.mxu0 %v1847
  %1874 = vmatprep.subr.bf16.mxu0 0
  %1875 = vmatpush2.bf16.msra.mxu0 0
  %1876 = vmatprep.subr.bf16.mxu0 0
  %1877 = vmatpush2.bf16.msra.mxu0 0
  %1878 = vmatprep.subr.bf16.mxu0 0
  %1879 = vmatpush2.bf16.msra.mxu0 0
  %1880 = vmatprep.subr.bf16.mxu0 0
  %1881 = vmatpush2.bf16.msra.mxu0 0
  %1882 = vmatprep.subr.bf16.mxu0 0
  %1883 = vmatpush2.bf16.msra.mxu0 0
  %1884 = vmatprep.subr.bf16.mxu0 0
  %1885 = vmatpush2.bf16.msra.mxu0 0
  %1886 = vmatprep.subr.bf16.mxu0 0
  %1887 = vmatpush2.bf16.msra.mxu0 0
  %1888 = vmatprep.subr.bf16.mxu0 0
  %1889 = vmatpush2.bf16.msra.mxu0 0
  %1890 = vmatprep.mubr.bf16.mxu0 0
  %1891 = vmatmul.mubr.bf16.gmra.mxu0 %v1853
  %v1892 = vpop.f32.mrf.mxu0
  %v1893 = vadd.f32 0.0, %v1892
  %v1894 = vpop.f32.mrf.mxu0
  %v1895 = vpop.f32.mrf.mxu0
  %v1896 = vadd.f32 0.0, %v1895
  %v1897 = vpop.f32.mrf.mxu0
  %1898 = vmatprep.mubr.bf16.mxu0 0
  %1899 = vmatmul.mubr.bf16.gmra.mxu0 %v1856
  %v1900 = vpop.f32.mrf.mxu0
  %v1901 = vadd.f32 0.0, %v1900
  %v1902 = vpop.f32.mrf.mxu0
  %v1903 = vpop.f32.mrf.mxu0
  %v1904 = vadd.f32 0.0, %v1903
  %v1905 = vpop.f32.mrf.mxu0
  %1906 = vdwg.mxu0
  %v1907 = vpack.c.bf16 %v1469, %v1466
  %v1908 = vpack.c.bf16 %v1477, %v1474
  %v1909 = vpack.c.bf16 %v1530, %v1527
  %v1910 = vpack.c.bf16 %v1538, %v1535
  %v1911 = vpack.c.bf16 %v1591, %v1588
  %v1912 = vpack.c.bf16 %v1599, %v1596
  %v1913 = vpack.c.bf16 %v1652, %v1649
  %v1914 = vpack.c.bf16 %v1660, %v1657
  %v1915 = vpack.c.bf16 %v1713, %v1710
  %v1916 = vpack.c.bf16 %v1721, %v1718
  %v1917 = vpack.c.bf16 %v1774, %v1771
  %v1918 = vpack.c.bf16 %v1782, %v1779
  %v1919 = vpack.c.bf16 %v1835, %v1832
  %v1920 = vpack.c.bf16 %v1843, %v1840
  %v1921 = vpack.c.bf16 %v1896, %v1893
  %v1922 = vpack.c.bf16 %v1904, %v1901
  %v1923 = vld [vmem:[%s4] sm:$0xf]
  %v1924 = vld [vmem:[%s4 + $0x4] sm:$0xf]
  %v1925 = vld [vmem:[%s4 + $0x8] sm:$0xf]
  %v1926 = vld [vmem:[%s4 + $0xc] sm:$0xf]
  %v1927 = vld [vmem:[%s4 + $0x10] sm:$0xf]
  %v1928 = vld [vmem:[%s4 + $0x14] sm:$0xf]
  %v1929 = vld [vmem:[%s4 + $0x18] sm:$0xf]
  %v1930 = vld [vmem:[%s4 + $0x1c] sm:$0xf]
  %v1932 = vsel %vm520, %v1907, 0
  %v1935 = vsel %vm520, %v1908, 0
  %vm1937 = vcmask 1043456
  %v1939 = vsel %vm1937, %v1923, 0
  %1941 = vmatprep.subr.bf16.mxu0 0
  %1942 = vmatpush1.bf16.msra.mxu0 0
  %1943 = vmatprep.subr.bf16.mxu0 0
  %1944 = vmatpush1.bf16.msra.mxu0 0
  %1945 = vmatprep.subr.bf16.mxu0 0
  %1946 = vmatpush1.bf16.msra.mxu0 0
  %1947 = vmatprep.subr.bf16.mxu0 0
  %1948 = vmatpush1.bf16.msra.mxu0 0
  %1949 = vmatprep.subr.bf16.mxu0 0
  %1950 = vmatpush1.bf16.msra.mxu0 0
  %1951 = vmatprep.subr.bf16.mxu0 0
  %1952 = vmatpush1.bf16.msra.mxu0 0
  %1953 = vmatprep.subr.bf16.mxu0 0
  %1954 = vmatpush1.bf16.msra.mxu0 0
  %1955 = vmatprep.subr.bf16.mxu0 0
  %1956 = vmatpush1.bf16.msra.mxu0 %v1939
  %1957 = vmatprep.subr.bf16.mxu0 0
  %1958 = vmatpush2.bf16.msra.mxu0 0
  %1959 = vmatprep.subr.bf16.mxu0 0
  %1960 = vmatpush2.bf16.msra.mxu0 0
  %1961 = vmatprep.subr.bf16.mxu0 0
  %1962 = vmatpush2.bf16.msra.mxu0 0
  %1963 = vmatprep.subr.bf16.mxu0 0
  %1964 = vmatpush2.bf16.msra.mxu0 0
  %1965 = vmatprep.subr.bf16.mxu0 0
  %1966 = vmatpush2.bf16.msra.mxu0 0
  %1967 = vmatprep.subr.bf16.mxu0 0
  %1968 = vmatpush2.bf16.msra.mxu0 0
  %1969 = vmatprep.subr.bf16.mxu0 0
  %1970 = vmatpush2.bf16.msra.mxu0 0
  %1971 = vmatprep.subr.bf16.mxu0 0
  %1972 = vmatpush2.bf16.msra.mxu0 0
  %1973 = vmatprep.mubr.bf16.mxu0 0
  %1974 = vmatmul.mubr.bf16.gmra.mxu0 %v1932
  %v1975 = vpop.f32.mrf.mxu0
  %v1976 = vadd.f32 0.0, %v1975
  %v1977 = vpop.f32.mrf.mxu0
  %v1978 = vpop.f32.mrf.mxu0
  %v1979 = vadd.f32 0.0, %v1978
  %v1980 = vpop.f32.mrf.mxu0
  %1981 = vmatprep.mubr.bf16.mxu0 0
  %1982 = vmatmul.mubr.bf16.gmra.mxu0 %v1935
  %v1983 = vpop.f32.mrf.mxu0
  %v1984 = vadd.f32 0.0, %v1983
  %v1985 = vpop.f32.mrf.mxu0
  %v1986 = vpop.f32.mrf.mxu0
  %v1987 = vadd.f32 0.0, %v1986
  %v1988 = vpop.f32.mrf.mxu0
  %1989 = vdwg.mxu0
  %v1991 = vsel %vm520, %v1909, 0
  %v1994 = vsel %vm520, %v1910, 0
  %v1997 = vsel %vm1937, %v1924, 0
  %1999 = vmatprep.subr.bf16.mxu0 0
  %2000 = vmatpush1.bf16.msra.mxu0 0
  %2001 = vmatprep.subr.bf16.mxu0 0
  %2002 = vmatpush1.bf16.msra.mxu0 0
  %2003 = vmatprep.subr.bf16.mxu0 0
  %2004 = vmatpush1.bf16.msra.mxu0 0
  %2005 = vmatprep.subr.bf16.mxu0 0
  %2006 = vmatpush1.bf16.msra.mxu0 0
  %2007 = vmatprep.subr.bf16.mxu0 0
  %2008 = vmatpush1.bf16.msra.mxu0 0
  %2009 = vmatprep.subr.bf16.mxu0 0
  %2010 = vmatpush1.bf16.msra.mxu0 0
  %2011 = vmatprep.subr.bf16.mxu0 0
  %2012 = vmatpush1.bf16.msra.mxu0 0
  %2013 = vmatprep.subr.bf16.mxu0 0
  %2014 = vmatpush1.bf16.msra.mxu0 %v1997
  %2015 = vmatprep.subr.bf16.mxu0 0
  %2016 = vmatpush2.bf16.msra.mxu0 0
  %2017 = vmatprep.subr.bf16.mxu0 0
  %2018 = vmatpush2.bf16.msra.mxu0 0
  %2019 = vmatprep.subr.bf16.mxu0 0
  %2020 = vmatpush2.bf16.msra.mxu0 0
  %2021 = vmatprep.subr.bf16.mxu0 0
  %2022 = vmatpush2.bf16.msra.mxu0 0
  %2023 = vmatprep.subr.bf16.mxu0 0
  %2024 = vmatpush2.bf16.msra.mxu0 0
  %2025 = vmatprep.subr.bf16.mxu0 0
  %2026 = vmatpush2.bf16.msra.mxu0 0
  %2027 = vmatprep.subr.bf16.mxu0 0
  %2028 = vmatpush2.bf16.msra.mxu0 0
  %2029 = vmatprep.subr.bf16.mxu0 0
  %2030 = vmatpush2.bf16.msra.mxu0 0
  %2031 = vmatprep.mubr.bf16.mxu0 0
  %2032 = vmatmul.mubr.bf16.gmra.mxu0 %v1991
  %v2033 = vpop.f32.mrf.mxu0
  %v2034 = vadd.f32 0.0, %v2033
  %v2035 = vpop.f32.mrf.mxu0
  %v2036 = vpop.f32.mrf.mxu0
  %v2037 = vadd.f32 0.0, %v2036
  %v2038 = vpop.f32.mrf.mxu0
  %2039 = vmatprep.mubr.bf16.mxu0 0
  %2040 = vmatmul.mubr.bf16.gmra.mxu0 %v1994
  %v2041 = vpop.f32.mrf.mxu0
  %v2042 = vadd.f32 0.0, %v2041
  %v2043 = vpop.f32.mrf.mxu0
  %v2044 = vpop.f32.mrf.mxu0
  %v2045 = vadd.f32 0.0, %v2044
  %v2046 = vpop.f32.mrf.mxu0
  %2047 = vdwg.mxu0
  %v2049 = vsel %vm520, %v1911, 0
  %v2052 = vsel %vm520, %v1912, 0
  %v2055 = vsel %vm1937, %v1925, 0
  %2057 = vmatprep.subr.bf16.mxu0 0
  %2058 = vmatpush1.bf16.msra.mxu0 0
  %2059 = vmatprep.subr.bf16.mxu0 0
  %2060 = vmatpush1.bf16.msra.mxu0 0
  %2061 = vmatprep.subr.bf16.mxu0 0
  %2062 = vmatpush1.bf16.msra.mxu0 0
  %2063 = vmatprep.subr.bf16.mxu0 0
  %2064 = vmatpush1.bf16.msra.mxu0 0
  %2065 = vmatprep.subr.bf16.mxu0 0
  %2066 = vmatpush1.bf16.msra.mxu0 0
  %2067 = vmatprep.subr.bf16.mxu0 0
  %2068 = vmatpush1.bf16.msra.mxu0 0
  %2069 = vmatprep.subr.bf16.mxu0 0
  %2070 = vmatpush1.bf16.msra.mxu0 0
  %2071 = vmatprep.subr.bf16.mxu0 0
  %2072 = vmatpush1.bf16.msra.mxu0 %v2055
  %2073 = vmatprep.subr.bf16.mxu0 0
  %2074 = vmatpush2.bf16.msra.mxu0 0
  %2075 = vmatprep.subr.bf16.mxu0 0
  %2076 = vmatpush2.bf16.msra.mxu0 0
  %2077 = vmatprep.subr.bf16.mxu0 0
  %2078 = vmatpush2.bf16.msra.mxu0 0
  %2079 = vmatprep.subr.bf16.mxu0 0
  %2080 = vmatpush2.bf16.msra.mxu0 0
  %2081 = vmatprep.subr.bf16.mxu0 0
  %2082 = vmatpush2.bf16.msra.mxu0 0
  %2083 = vmatprep.subr.bf16.mxu0 0
  %2084 = vmatpush2.bf16.msra.mxu0 0
  %2085 = vmatprep.subr.bf16.mxu0 0
  %2086 = vmatpush2.bf16.msra.mxu0 0
  %2087 = vmatprep.subr.bf16.mxu0 0
  %2088 = vmatpush2.bf16.msra.mxu0 0
  %2089 = vmatprep.mubr.bf16.mxu0 0
  %2090 = vmatmul.mubr.bf16.gmra.mxu0 %v2049
  %v2091 = vpop.f32.mrf.mxu0
  %v2092 = vadd.f32 0.0, %v2091
  %v2093 = vpop.f32.mrf.mxu0
  %v2094 = vpop.f32.mrf.mxu0
  %v2095 = vadd.f32 0.0, %v2094
  %v2096 = vpop.f32.mrf.mxu0
  %2097 = vmatprep.mubr.bf16.mxu0 0
  %2098 = vmatmul.mubr.bf16.gmra.mxu0 %v2052
  %v2099 = vpop.f32.mrf.mxu0
  %v2100 = vadd.f32 0.0, %v2099
  %v2101 = vpop.f32.mrf.mxu0
  %v2102 = vpop.f32.mrf.mxu0
  %v2103 = vadd.f32 0.0, %v2102
  %v2104 = vpop.f32.mrf.mxu0
  %2105 = vdwg.mxu0
  %v2107 = vsel %vm520, %v1913, 0
  %v2110 = vsel %vm520, %v1914, 0
  %v2113 = vsel %vm1937, %v1926, 0
  %2115 = vmatprep.subr.bf16.mxu0 0
  %2116 = vmatpush1.bf16.msra.mxu0 0
  %2117 = vmatprep.subr.bf16.mxu0 0
  %2118 = vmatpush1.bf16.msra.mxu0 0
  %2119 = vmatprep.subr.bf16.mxu0 0
  %2120 = vmatpush1.bf16.msra.mxu0 0
  %2121 = vmatprep.subr.bf16.mxu0 0
  %2122 = vmatpush1.bf16.msra.mxu0 0
  %2123 = vmatprep.subr.bf16.mxu0 0
  %2124 = vmatpush1.bf16.msra.mxu0 0
  %2125 = vmatprep.subr.bf16.mxu0 0
  %2126 = vmatpush1.bf16.msra.mxu0 0
  %2127 = vmatprep.subr.bf16.mxu0 0
  %2128 = vmatpush1.bf16.msra.mxu0 0
  %2129 = vmatprep.subr.bf16.mxu0 0
  %2130 = vmatpush1.bf16.msra.mxu0 %v2113
  %2131 = vmatprep.subr.bf16.mxu0 0
  %2132 = vmatpush2.bf16.msra.mxu0 0
  %2133 = vmatprep.subr.bf16.mxu0 0
  %2134 = vmatpush2.bf16.msra.mxu0 0
  %2135 = vmatprep.subr.bf16.mxu0 0
  %2136 = vmatpush2.bf16.msra.mxu0 0
  %2137 = vmatprep.subr.bf16.mxu0 0
  %2138 = vmatpush2.bf16.msra.mxu0 0
  %2139 = vmatprep.subr.bf16.mxu0 0
  %2140 = vmatpush2.bf16.msra.mxu0 0
  %2141 = vmatprep.subr.bf16.mxu0 0
  %2142 = vmatpush2.bf16.msra.mxu0 0
  %2143 = vmatprep.subr.bf16.mxu0 0
  %2144 = vmatpush2.bf16.msra.mxu0 0
  %2145 = vmatprep.subr.bf16.mxu0 0
  %2146 = vmatpush2.bf16.msra.mxu0 0
  %2147 = vmatprep.mubr.bf16.mxu0 0
  %2148 = vmatmul.mubr.bf16.gmra.mxu0 %v2107
  %v2149 = vpop.f32.mrf.mxu0
  %v2150 = vadd.f32 0.0, %v2149
  %v2151 = vpop.f32.mrf.mxu0
  %v2152 = vpop.f32.mrf.mxu0
  %v2153 = vadd.f32 0.0, %v2152
  %v2154 = vpop.f32.mrf.mxu0
  %2155 = vmatprep.mubr.bf16.mxu0 0
  %2156 = vmatmul.mubr.bf16.gmra.mxu0 %v2110
  %v2157 = vpop.f32.mrf.mxu0
  %v2158 = vadd.f32 0.0, %v2157
  %v2159 = vpop.f32.mrf.mxu0
  %v2160 = vpop.f32.mrf.mxu0
  %v2161 = vadd.f32 0.0, %v2160
  %v2162 = vpop.f32.mrf.mxu0
  %2163 = vdwg.mxu0
  %v2165 = vsel %vm520, %v1915, 0
  %v2168 = vsel %vm520, %v1916, 0
  %v2171 = vsel %vm1937, %v1927, 0
  %2173 = vmatprep.subr.bf16.mxu0 0
  %2174 = vmatpush1.bf16.msra.mxu0 0
  %2175 = vmatprep.subr.bf16.mxu0 0
  %2176 = vmatpush1.bf16.msra.mxu0 0
  %2177 = vmatprep.subr.bf16.mxu0 0
  %2178 = vmatpush1.bf16.msra.mxu0 0
  %2179 = vmatprep.subr.bf16.mxu0 0
  %2180 = vmatpush1.bf16.msra.mxu0 0
  %2181 = vmatprep.subr.bf16.mxu0 0
  %2182 = vmatpush1.bf16.msra.mxu0 0
  %2183 = vmatprep.subr.bf16.mxu0 0
  %2184 = vmatpush1.bf16.msra.mxu0 0
  %2185 = vmatprep.subr.bf16.mxu0 0
  %2186 = vmatpush1.bf16.msra.mxu0 0
  %2187 = vmatprep.subr.bf16.mxu0 0
  %2188 = vmatpush1.bf16.msra.mxu0 %v2171
  %2189 = vmatprep.subr.bf16.mxu0 0
  %2190 = vmatpush2.bf16.msra.mxu0 0
  %2191 = vmatprep.subr.bf16.mxu0 0
  %2192 = vmatpush2.bf16.msra.mxu0 0
  %2193 = vmatprep.subr.bf16.mxu0 0
  %2194 = vmatpush2.bf16.msra.mxu0 0
  %2195 = vmatprep.subr.bf16.mxu0 0
  %2196 = vmatpush2.bf16.msra.mxu0 0
  %2197 = vmatprep.subr.bf16.mxu0 0
  %2198 = vmatpush2.bf16.msra.mxu0 0
  %2199 = vmatprep.subr.bf16.mxu0 0
  %2200 = vmatpush2.bf16.msra.mxu0 0
  %2201 = vmatprep.subr.bf16.mxu0 0
  %2202 = vmatpush2.bf16.msra.mxu0 0
  %2203 = vmatprep.subr.bf16.mxu0 0
  %2204 = vmatpush2.bf16.msra.mxu0 0
  %2205 = vmatprep.mubr.bf16.mxu0 0
  %2206 = vmatmul.mubr.bf16.gmra.mxu0 %v2165
  %v2207 = vpop.f32.mrf.mxu0
  %v2208 = vadd.f32 0.0, %v2207
  %v2209 = vpop.f32.mrf.mxu0
  %v2210 = vpop.f32.mrf.mxu0
  %v2211 = vadd.f32 0.0, %v2210
  %v2212 = vpop.f32.mrf.mxu0
  %2213 = vmatprep.mubr.bf16.mxu0 0
  %2214 = vmatmul.mubr.bf16.gmra.mxu0 %v2168
  %v2215 = vpop.f32.mrf.mxu0
  %v2216 = vadd.f32 0.0, %v2215
  %v2217 = vpop.f32.mrf.mxu0
  %v2218 = vpop.f32.mrf.mxu0
  %v2219 = vadd.f32 0.0, %v2218
  %v2220 = vpop.f32.mrf.mxu0
  %2221 = vdwg.mxu0
  %v2223 = vsel %vm520, %v1917, 0
  %v2226 = vsel %vm520, %v1918, 0
  %v2229 = vsel %vm1937, %v1928, 0
  %2231 = vmatprep.subr.bf16.mxu0 0
  %2232 = vmatpush1.bf16.msra.mxu0 0
  %2233 = vmatprep.subr.bf16.mxu0 0
  %2234 = vmatpush1.bf16.msra.mxu0 0
  %2235 = vmatprep.subr.bf16.mxu0 0
  %2236 = vmatpush1.bf16.msra.mxu0 0
  %2237 = vmatprep.subr.bf16.mxu0 0
  %2238 = vmatpush1.bf16.msra.mxu0 0
  %2239 = vmatprep.subr.bf16.mxu0 0
  %2240 = vmatpush1.bf16.msra.mxu0 0
  %2241 = vmatprep.subr.bf16.mxu0 0
  %2242 = vmatpush1.bf16.msra.mxu0 0
  %2243 = vmatprep.subr.bf16.mxu0 0
  %2244 = vmatpush1.bf16.msra.mxu0 0
  %2245 = vmatprep.subr.bf16.mxu0 0
  %2246 = vmatpush1.bf16.msra.mxu0 %v2229
  %2247 = vmatprep.subr.bf16.mxu0 0
  %2248 = vmatpush2.bf16.msra.mxu0 0
  %2249 = vmatprep.subr.bf16.mxu0 0
  %2250 = vmatpush2.bf16.msra.mxu0 0
  %2251 = vmatprep.subr.bf16.mxu0 0
  %2252 = vmatpush2.bf16.msra.mxu0 0
  %2253 = vmatprep.subr.bf16.mxu0 0
  %2254 = vmatpush2.bf16.msra.mxu0 0
  %2255 = vmatprep.subr.bf16.mxu0 0
  %2256 = vmatpush2.bf16.msra.mxu0 0
  %2257 = vmatprep.subr.bf16.mxu0 0
  %2258 = vmatpush2.bf16.msra.mxu0 0
  %2259 = vmatprep.subr.bf16.mxu0 0
  %2260 = vmatpush2.bf16.msra.mxu0 0
  %2261 = vmatprep.subr.bf16.mxu0 0
  %2262 = vmatpush2.bf16.msra.mxu0 0
  %2263 = vmatprep.mubr.bf16.mxu0 0
  %2264 = vmatmul.mubr.bf16.gmra.mxu0 %v2223
  %v2265 = vpop.f32.mrf.mxu0
  %v2266 = vadd.f32 0.0, %v2265
  %v2267 = vpop.f32.mrf.mxu0
  %v2268 = vpop.f32.mrf.mxu0
  %v2269 = vadd.f32 0.0, %v2268
  %v2270 = vpop.f32.mrf.mxu0
  %2271 = vmatprep.mubr.bf16.mxu0 0
  %2272 = vmatmul.mubr.bf16.gmra.mxu0 %v2226
  %v2273 = vpop.f32.mrf.mxu0
  %v2274 = vadd.f32 0.0, %v2273
  %v2275 = vpop.f32.mrf.mxu0
  %v2276 = vpop.f32.mrf.mxu0
  %v2277 = vadd.f32 0.0, %v2276
  %v2278 = vpop.f32.mrf.mxu0
  %2279 = vdwg.mxu0
  %v2281 = vsel %vm520, %v1919, 0
  %v2284 = vsel %vm520, %v1920, 0
  %v2287 = vsel %vm1937, %v1929, 0
  %2289 = vmatprep.subr.bf16.mxu0 0
  %2290 = vmatpush1.bf16.msra.mxu0 0
  %2291 = vmatprep.subr.bf16.mxu0 0
  %2292 = vmatpush1.bf16.msra.mxu0 0
  %2293 = vmatprep.subr.bf16.mxu0 0
  %2294 = vmatpush1.bf16.msra.mxu0 0
  %2295 = vmatprep.subr.bf16.mxu0 0
  %2296 = vmatpush1.bf16.msra.mxu0 0
  %2297 = vmatprep.subr.bf16.mxu0 0
  %2298 = vmatpush1.bf16.msra.mxu0 0
  %2299 = vmatprep.subr.bf16.mxu0 0
  %2300 = vmatpush1.bf16.msra.mxu0 0
  %2301 = vmatprep.subr.bf16.mxu0 0
  %2302 = vmatpush1.bf16.msra.mxu0 0
  %2303 = vmatprep.subr.bf16.mxu0 0
  %2304 = vmatpush1.bf16.msra.mxu0 %v2287
  %2305 = vmatprep.subr.bf16.mxu0 0
  %2306 = vmatpush2.bf16.msra.mxu0 0
  %2307 = vmatprep.subr.bf16.mxu0 0
  %2308 = vmatpush2.bf16.msra.mxu0 0
  %2309 = vmatprep.subr.bf16.mxu0 0
  %2310 = vmatpush2.bf16.msra.mxu0 0
  %2311 = vmatprep.subr.bf16.mxu0 0
  %2312 = vmatpush2.bf16.msra.mxu0 0
  %2313 = vmatprep.subr.bf16.mxu0 0
  %2314 = vmatpush2.bf16.msra.mxu0 0
  %2315 = vmatprep.subr.bf16.mxu0 0
  %2316 = vmatpush2.bf16.msra.mxu0 0
  %2317 = vmatprep.subr.bf16.mxu0 0
  %2318 = vmatpush2.bf16.msra.mxu0 0
  %2319 = vmatprep.subr.bf16.mxu0 0
  %2320 = vmatpush2.bf16.msra.mxu0 0
  %2321 = vmatprep.mubr.bf16.mxu0 0
  %2322 = vmatmul.mubr.bf16.gmra.mxu0 %v2281
  %v2323 = vpop.f32.mrf.mxu0
  %v2324 = vadd.f32 0.0, %v2323
  %v2325 = vpop.f32.mrf.mxu0
  %v2326 = vpop.f32.mrf.mxu0
  %v2327 = vadd.f32 0.0, %v2326
  %v2328 = vpop.f32.mrf.mxu0
  %2329 = vmatprep.mubr.bf16.mxu0 0
  %2330 = vmatmul.mubr.bf16.gmra.mxu0 %v2284
  %v2331 = vpop.f32.mrf.mxu0
  %v2332 = vadd.f32 0.0, %v2331
  %v2333 = vpop.f32.mrf.mxu0
  %v2334 = vpop.f32.mrf.mxu0
  %v2335 = vadd.f32 0.0, %v2334
  %v2336 = vpop.f32.mrf.mxu0
  %2337 = vdwg.mxu0
  %v2339 = vsel %vm520, %v1921, 0
  %v2342 = vsel %vm520, %v1922, 0
  %v2345 = vsel %vm1937, %v1930, 0
  %2347 = vmatprep.subr.bf16.mxu0 0
  %2348 = vmatpush1.bf16.msra.mxu0 0
  %2349 = vmatprep.subr.bf16.mxu0 0
  %2350 = vmatpush1.bf16.msra.mxu0 0
  %2351 = vmatprep.subr.bf16.mxu0 0
  %2352 = vmatpush1.bf16.msra.mxu0 0
  %2353 = vmatprep.subr.bf16.mxu0 0
  %2354 = vmatpush1.bf16.msra.mxu0 0
  %2355 = vmatprep.subr.bf16.mxu0 0
  %2356 = vmatpush1.bf16.msra.mxu0 0
  %2357 = vmatprep.subr.bf16.mxu0 0
  %2358 = vmatpush1.bf16.msra.mxu0 0
  %2359 = vmatprep.subr.bf16.mxu0 0
  %2360 = vmatpush1.bf16.msra.mxu0 0
  %2361 = vmatprep.subr.bf16.mxu0 0
  %2362 = vmatpush1.bf16.msra.mxu0 %v2345
  %2363 = vmatprep.subr.bf16.mxu0 0
  %2364 = vmatpush2.bf16.msra.mxu0 0
  %2365 = vmatprep.subr.bf16.mxu0 0
  %2366 = vmatpush2.bf16.msra.mxu0 0
  %2367 = vmatprep.subr.bf16.mxu0 0
  %2368 = vmatpush2.bf16.msra.mxu0 0
  %2369 = vmatprep.subr.bf16.mxu0 0
  %2370 = vmatpush2.bf16.msra.mxu0 0
  %2371 = vmatprep.subr.bf16.mxu0 0
  %2372 = vmatpush2.bf16.msra.mxu0 0
  %2373 = vmatprep.subr.bf16.mxu0 0
  %2374 = vmatpush2.bf16.msra.mxu0 0
  %2375 = vmatprep.subr.bf16.mxu0 0
  %2376 = vmatpush2.bf16.msra.mxu0 0
  %2377 = vmatprep.subr.bf16.mxu0 0
  %2378 = vmatpush2.bf16.msra.mxu0 0
  %2379 = vmatprep.mubr.bf16.mxu0 0
  %2380 = vmatmul.mubr.bf16.gmra.mxu0 %v2339
  %v2381 = vpop.f32.mrf.mxu0
  %v2382 = vadd.f32 0.0, %v2381
  %v2383 = vpop.f32.mrf.mxu0
  %v2384 = vpop.f32.mrf.mxu0
  %v2385 = vadd.f32 0.0, %v2384
  %v2386 = vpop.f32.mrf.mxu0
  %2387 = vmatprep.mubr.bf16.mxu0 0
  %2388 = vmatmul.mubr.bf16.gmra.mxu0 %v2342
  %v2389 = vpop.f32.mrf.mxu0
  %v2390 = vadd.f32 0.0, %v2389
  %v2391 = vpop.f32.mrf.mxu0
  %v2392 = vpop.f32.mrf.mxu0
  %v2393 = vadd.f32 0.0, %v2392
  %v2394 = vpop.f32.mrf.mxu0
  %2395 = vdwg.mxu0
  %v2396 = vadd.f32 %v1976, %v2034
  %v2397 = vadd.f32 %v1979, %v2037
  %v2398 = vadd.f32 %v1984, %v2042
  %v2399 = vadd.f32 %v1987, %v2045
  %v2400 = vadd.f32 %v2396, %v2092
  %v2401 = vadd.f32 %v2397, %v2095
  %v2402 = vadd.f32 %v2398, %v2100
  %v2403 = vadd.f32 %v2399, %v2103
  %v2404 = vadd.f32 %v2400, %v2150
  %v2405 = vadd.f32 %v2401, %v2153
  %v2406 = vadd.f32 %v2402, %v2158
  %v2407 = vadd.f32 %v2403, %v2161
  %v2408 = vadd.f32 %v2208, %v2266
  %v2409 = vadd.f32 %v2211, %v2269
  %v2410 = vadd.f32 %v2216, %v2274
  %v2411 = vadd.f32 %v2219, %v2277
  %v2412 = vadd.f32 %v2408, %v2324
  %v2413 = vadd.f32 %v2409, %v2327
  %v2414 = vadd.f32 %v2410, %v2332
  %v2415 = vadd.f32 %v2411, %v2335
  %v2416 = vadd.f32 %v2412, %v2382
  %v2417 = vadd.f32 %v2413, %v2385
  %v2418 = vadd.f32 %v2414, %v2390
  %v2419 = vadd.f32 %v2415, %v2393
  %v2420 = vld [vmem:[%s5] sm:$0x1]
  %v2422 = vlaneseq
  %v2423 = vshrl.u32 %v2422, 7
  %v2424 = vsub.s32 0, %v2423
  %v2425 = vrot.slane %v2420, %v2424
  %v2427 = vadd.f32 %v2404, %v2425
  %v2428 = vadd.f32 %v2405, %v2425
  %v2429 = vadd.f32 %v2406, %v2425
  %v2430 = vadd.f32 %v2407, %v2425
  %v2431 = vadd.f32 %v2416, %v2425
  %v2432 = vadd.f32 %v2417, %v2425
  %v2433 = vadd.f32 %v2418, %v2425
  %v2434 = vadd.f32 %v2419, %v2425
  %v2435 = vadd.f32 %v42, %v2427
  %v2436 = vadd.f32 %v43, %v2428
  %v2437 = vadd.f32 %v44, %v2429
  %v2438 = vadd.f32 %v45, %v2430
  %v2439 = vadd.f32 %v46, %v2431
  %v2440 = vadd.f32 %v47, %v2432
  %v2441 = vadd.f32 %v48, %v2433
  %v2442 = vadd.f32 %v49, %v2434
  %v2443 = vsel %vm50, %v2435, 0.0
  %2444 = vadd.xlane.f32.xlu0 %v2443
  %v2445 = vpop.xlane.xlu0 %2444
  %v2446 = vsel %vm50, %v2436, 0.0
  %2447 = vadd.xlane.f32.xlu0 %v2446
  %v2448 = vpop.xlane.xlu0 %2447
  %v2449 = vsel %vm50, %v2437, 0.0
  %2450 = vadd.xlane.f32.xlu0 %v2449
  %v2451 = vpop.xlane.xlu0 %2450
  %v2452 = vsel %vm50, %v2438, 0.0
  %2453 = vadd.xlane.f32.xlu0 %v2452
  %v2454 = vpop.xlane.xlu0 %2453
  %v2455 = vsel %vm50, %v2439, 0.0
  %2456 = vadd.xlane.f32.xlu0 %v2455
  %v2457 = vpop.xlane.xlu0 %2456
  %v2458 = vsel %vm50, %v2440, 0.0
  %2459 = vadd.xlane.f32.xlu0 %v2458
  %v2460 = vpop.xlane.xlu0 %2459
  %v2461 = vsel %vm50, %v2441, 0.0
  %2462 = vadd.xlane.f32.xlu0 %v2461
  %v2463 = vpop.xlane.xlu0 %2462
  %v2464 = vsel %vm50, %v2442, 0.0
  %2465 = vadd.xlane.f32.xlu0 %v2464
  %v2466 = vpop.xlane.xlu0 %2465
  %v2467 = vmul.f32 %v2445, %v75
  %v2468 = vmul.f32 %v2448, %v75
  %v2469 = vmul.f32 %v2451, %v75
  %v2470 = vmul.f32 %v2454, %v75
  %v2471 = vmul.f32 %v2457, %v75
  %v2472 = vmul.f32 %v2460, %v75
  %v2473 = vmul.f32 %v2463, %v75
  %v2474 = vmul.f32 %v2466, %v75
  %v2475 = vmul.f32 %v2435, %v2435
  %v2476 = vmul.f32 %v2436, %v2436
  %v2477 = vmul.f32 %v2437, %v2437
  %v2478 = vmul.f32 %v2438, %v2438
  %v2479 = vmul.f32 %v2439, %v2439
  %v2480 = vmul.f32 %v2440, %v2440
  %v2481 = vmul.f32 %v2441, %v2441
  %v2482 = vmul.f32 %v2442, %v2442
  %v2483 = vsel %vm50, %v2475, 0.0
  %2484 = vadd.xlane.f32.xlu0 %v2483
  %v2485 = vpop.xlane.xlu0 %2484
  %v2486 = vsel %vm50, %v2476, 0.0
  %2487 = vadd.xlane.f32.xlu0 %v2486
  %v2488 = vpop.xlane.xlu0 %2487
  %v2489 = vsel %vm50, %v2477, 0.0
  %2490 = vadd.xlane.f32.xlu0 %v2489
  %v2491 = vpop.xlane.xlu0 %2490
  %v2492 = vsel %vm50, %v2478, 0.0
  %2493 = vadd.xlane.f32.xlu0 %v2492
  %v2494 = vpop.xlane.xlu0 %2493
  %v2495 = vsel %vm50, %v2479, 0.0
  %2496 = vadd.xlane.f32.xlu0 %v2495
  %v2497 = vpop.xlane.xlu0 %2496
  %v2498 = vsel %vm50, %v2480, 0.0
  %2499 = vadd.xlane.f32.xlu0 %v2498
  %v2500 = vpop.xlane.xlu0 %2499
  %v2501 = vsel %vm50, %v2481, 0.0
  %2502 = vadd.xlane.f32.xlu0 %v2501
  %v2503 = vpop.xlane.xlu0 %2502
  %v2504 = vsel %vm50, %v2482, 0.0
  %2505 = vadd.xlane.f32.xlu0 %v2504
  %v2506 = vpop.xlane.xlu0 %2505
  %v2507 = vmul.f32 %v2485, %v75
  %v2508 = vmul.f32 %v2488, %v75
  %v2509 = vmul.f32 %v2491, %v75
  %v2510 = vmul.f32 %v2494, %v75
  %v2511 = vmul.f32 %v2497, %v75
  %v2512 = vmul.f32 %v2500, %v75
  %v2513 = vmul.f32 %v2503, %v75
  %v2514 = vmul.f32 %v2506, %v75
  %v2515 = vsub.f32 %v2435, %v2467
  %v2516 = vsub.f32 %v2436, %v2468
  %v2517 = vsub.f32 %v2437, %v2469
  %v2518 = vsub.f32 %v2438, %v2470
  %v2519 = vsub.f32 %v2439, %v2471
  %v2520 = vsub.f32 %v2440, %v2472
  %v2521 = vsub.f32 %v2441, %v2473
  %v2522 = vsub.f32 %v2442, %v2474
  %v2523 = vmul.f32 %v2467, %v2467
  %v2524 = vmul.f32 %v2468, %v2468
  %v2525 = vmul.f32 %v2469, %v2469
  %v2526 = vmul.f32 %v2470, %v2470
  %v2527 = vmul.f32 %v2471, %v2471
  %v2528 = vmul.f32 %v2472, %v2472
  %v2529 = vmul.f32 %v2473, %v2473
  %v2530 = vmul.f32 %v2474, %v2474
  %v2531 = vsub.f32 %v2507, %v2523
  %v2532 = vsub.f32 %v2508, %v2524
  %v2533 = vsub.f32 %v2509, %v2525
  %v2534 = vsub.f32 %v2510, %v2526
  %v2535 = vsub.f32 %v2511, %v2527
  %v2536 = vsub.f32 %v2512, %v2528
  %v2537 = vsub.f32 %v2513, %v2529
  %v2538 = vsub.f32 %v2514, %v2530
  %v2539 = vadd.f32 %v2531, 1e-05
  %v2540 = vadd.f32 %v2532, 1e-05
  %v2541 = vadd.f32 %v2533, 1e-05
  %v2542 = vadd.f32 %v2534, 1e-05
  %v2543 = vadd.f32 %v2535, 1e-05
  %v2544 = vadd.f32 %v2536, 1e-05
  %v2545 = vadd.f32 %v2537, 1e-05
  %v2546 = vadd.f32 %v2538, 1e-05
  %v2547 = vrsqrt.pop %v2539
  %v2548 = vrsqrt.pop %v2540
  %v2549 = vrsqrt.pop %v2541
  %v2550 = vrsqrt.pop %v2542
  %v2551 = vrsqrt.pop %v2543
  %v2552 = vrsqrt.pop %v2544
  %v2553 = vrsqrt.pop %v2545
  %v2554 = vrsqrt.pop %v2546
  %v2555 = vmul.f32 %v2515, %v2547
  %v2556 = vmul.f32 %v2516, %v2548
  %v2557 = vmul.f32 %v2517, %v2549
  %v2558 = vmul.f32 %v2518, %v2550
  %v2559 = vmul.f32 %v2519, %v2551
  %v2560 = vmul.f32 %v2520, %v2552
  %v2561 = vmul.f32 %v2521, %v2553
  %v2562 = vmul.f32 %v2522, %v2554
  %v2563 = vld [vmem:[%s6] sm:$0x1]
  %v2565 = vlaneseq
  %v2566 = vshrl.u32 %v2565, 7
  %v2567 = vsub.s32 0, %v2566
  %v2568 = vrot.slane %v2563, %v2567
  %v2570 = vmul.f32 %v2555, %v2568
  %v2571 = vmul.f32 %v2556, %v2568
  %v2572 = vmul.f32 %v2557, %v2568
  %v2573 = vmul.f32 %v2558, %v2568
  %v2574 = vmul.f32 %v2559, %v2568
  %v2575 = vmul.f32 %v2560, %v2568
  %v2576 = vmul.f32 %v2561, %v2568
  %v2577 = vmul.f32 %v2562, %v2568
  %v2578 = vld [vmem:[%s7] sm:$0x1]
  %v2580 = vlaneseq
  %v2581 = vshrl.u32 %v2580, 7
  %v2582 = vsub.s32 0, %v2581
  %v2583 = vrot.slane %v2578, %v2582
  %v2585 = vadd.f32 %v2570, %v2583
  %v2586 = vadd.f32 %v2571, %v2583
  %v2587 = vadd.f32 %v2572, %v2583
  %v2588 = vadd.f32 %v2573, %v2583
  %v2589 = vadd.f32 %v2574, %v2583
  %v2590 = vadd.f32 %v2575, %v2583
  %v2591 = vadd.f32 %v2576, %v2583
  %v2592 = vadd.f32 %v2577, %v2583
  %v2593 = vpack.c.bf16 %v2586, %v2585
  %v2594 = vpack.c.bf16 %v2588, %v2587
  %v2595 = vpack.c.bf16 %v2590, %v2589
  %v2596 = vpack.c.bf16 %v2592, %v2591
  %v2597 = vld [vmem:[%s8] sm:$0xf]
  %v2598 = vld [vmem:[%s8 + $0x4] sm:$0xf]
  %v2599 = vld [vmem:[%s8 + $0x8] sm:$0xf]
  %v2600 = vld [vmem:[%s8 + $0xc] sm:$0xf]
  %v2601 = vld [vmem:[%s9] sm:$0x1]
  %v2603 = vlaneseq
  %v2604 = vshrl.u32 %v2603, 7
  %v2605 = vsub.s32 0, %v2604
  %v2606 = vrot.slane %v2601, %v2605
  %v2612 = vunpack.c.l.b16 %v2597
  %v2613 = vunpack.c.l.b16 %v2598
  %v2614 = vunpack.c.l.b16 %v2599
  %v2615 = vunpack.c.l.b16 %v2600
  %v2616 = vpack.c.b16 %v2613, %v2612
  %v2617 = vpack.c.b16 %v2615, %v2614
  %v2621 = vsel %vm50, %v2593, 0
  %v2624 = vsel %vm50, %v2594, 0
  %v2627 = vsel %vm50, %v2595, 0
  %v2630 = vsel %vm50, %v2596, 0
  %2632 = vmatprep.subr.bf16.mxu0 0
  %2633 = vmatpush1.bf16.msra.mxu0 0
  %2634 = vmatprep.subr.bf16.mxu0 0
  %2635 = vmatpush1.bf16.msra.mxu0 0
  %2636 = vmatprep.subr.bf16.mxu0 0
  %2637 = vmatpush1.bf16.msra.mxu0 0
  %2638 = vmatprep.subr.bf16.mxu0 0
  %2639 = vmatpush1.bf16.msra.mxu0 0
  %2640 = vmatprep.subr.bf16.mxu0 0
  %2641 = vmatpush1.bf16.msra.mxu0 0
  %2642 = vmatprep.subr.bf16.mxu0 0
  %2643 = vmatpush1.bf16.msra.mxu0 0
  %2644 = vmatprep.subr.bf16.mxu0 0
  %2645 = vmatpush1.bf16.msra.mxu0 %v2617
  %2646 = vmatprep.subr.bf16.mxu0 0
  %2647 = vmatpush1.bf16.msra.mxu0 %v2616
  %2648 = vmatprep.subr.bf16.mxu0 0
  %2649 = vmatpush2.bf16.msra.mxu0 0
  %2650 = vmatprep.subr.bf16.mxu0 0
  %2651 = vmatpush2.bf16.msra.mxu0 0
  %2652 = vmatprep.subr.bf16.mxu0 0
  %2653 = vmatpush2.bf16.msra.mxu0 0
  %2654 = vmatprep.subr.bf16.mxu0 0
  %2655 = vmatpush2.bf16.msra.mxu0 0
  %2656 = vmatprep.subr.bf16.mxu0 0
  %2657 = vmatpush2.bf16.msra.mxu0 0
  %2658 = vmatprep.subr.bf16.mxu0 0
  %2659 = vmatpush2.bf16.msra.mxu0 0
  %2660 = vmatprep.subr.bf16.mxu0 0
  %2661 = vmatpush2.bf16.msra.mxu0 0
  %2662 = vmatprep.subr.bf16.mxu0 0
  %2663 = vmatpush2.bf16.msra.mxu0 0
  %2664 = vmatprep.mubr.bf16.mxu0 0
  %2665 = vmatmul.mubr.bf16.gmra.mxu0 %v2621
  %v2666 = vpop.f32.mrf.mxu0
  %v2667 = vadd.f32 %v2606, %v2666
  %v2668 = vpop.f32.mrf.mxu0
  %v2669 = vpop.f32.mrf.mxu0
  %v2670 = vadd.f32 %v2606, %v2669
  %v2671 = vpop.f32.mrf.mxu0
  %2672 = vmatprep.mubr.bf16.mxu0 0
  %2673 = vmatmul.mubr.bf16.gmra.mxu0 %v2624
  %v2674 = vpop.f32.mrf.mxu0
  %v2675 = vadd.f32 %v2606, %v2674
  %v2676 = vpop.f32.mrf.mxu0
  %v2677 = vpop.f32.mrf.mxu0
  %v2678 = vadd.f32 %v2606, %v2677
  %v2679 = vpop.f32.mrf.mxu0
  %2680 = vmatprep.mubr.bf16.mxu0 0
  %2681 = vmatmul.mubr.bf16.gmra.mxu0 %v2627
  %v2682 = vpop.f32.mrf.mxu0
  %v2683 = vadd.f32 %v2606, %v2682
  %v2684 = vpop.f32.mrf.mxu0
  %v2685 = vpop.f32.mrf.mxu0
  %v2686 = vadd.f32 %v2606, %v2685
  %v2687 = vpop.f32.mrf.mxu0
  %2688 = vmatprep.mubr.bf16.mxu0 0
  %2689 = vmatmul.mubr.bf16.gmra.mxu0 %v2630
  %v2690 = vpop.f32.mrf.mxu0
  %v2691 = vadd.f32 %v2606, %v2690
  %v2692 = vpop.f32.mrf.mxu0
  %v2693 = vpop.f32.mrf.mxu0
  %v2694 = vadd.f32 %v2606, %v2693
  %v2695 = vpop.f32.mrf.mxu0
  %2696 = vdwg.mxu0
  %v2697 = vmul.f32 %v2667, 1.702
  %v2698 = vmul.f32 %v2670, 1.702
  %v2699 = vmul.f32 %v2675, 1.702
  %v2700 = vmul.f32 %v2678, 1.702
  %v2701 = vmul.f32 %v2683, 1.702
  %v2702 = vmul.f32 %v2686, 1.702
  %v2703 = vmul.f32 %v2691, 1.702
  %v2704 = vmul.f32 %v2694, 1.702
  %v2705 = vxor.u32 %v2697, 2147483648
  %v2706 = vxor.u32 %v2698, 2147483648
  %v2707 = vxor.u32 %v2699, 2147483648
  %v2708 = vxor.u32 %v2700, 2147483648
  %v2709 = vxor.u32 %v2701, 2147483648
  %v2710 = vxor.u32 %v2702, 2147483648
  %v2711 = vxor.u32 %v2703, 2147483648
  %v2712 = vxor.u32 %v2704, 2147483648
  %v2713 = vmul.f32 %v2705, 1.442695
  %v2714 = vpow.pop %v2713
  %v2715 = vmul.f32 %v2706, 1.442695
  %v2716 = vpow.pop %v2715
  %v2717 = vmul.f32 %v2707, 1.442695
  %v2718 = vpow.pop %v2717
  %v2719 = vmul.f32 %v2708, 1.442695
  %v2720 = vpow.pop %v2719
  %v2721 = vmul.f32 %v2709, 1.442695
  %v2722 = vpow.pop %v2721
  %v2723 = vmul.f32 %v2710, 1.442695
  %v2724 = vpow.pop %v2723
  %v2725 = vmul.f32 %v2711, 1.442695
  %v2726 = vpow.pop %v2725
  %v2727 = vmul.f32 %v2712, 1.442695
  %v2728 = vpow.pop %v2727
  %v2729 = vadd.f32 %v2714, 1.0
  %v2730 = vadd.f32 %v2716, 1.0
  %v2731 = vadd.f32 %v2718, 1.0
  %v2732 = vadd.f32 %v2720, 1.0
  %v2733 = vadd.f32 %v2722, 1.0
  %v2734 = vadd.f32 %v2724, 1.0
  %v2735 = vadd.f32 %v2726, 1.0
  %v2736 = vadd.f32 %v2728, 1.0
  %v2737 = vrcp.pop %v2729
  %v2738 = vmul.f32 1.0, %v2737
  %v2739 = vrcp.pop %v2730
  %v2740 = vmul.f32 1.0, %v2739
  %v2741 = vrcp.pop %v2731
  %v2742 = vmul.f32 1.0, %v2741
  %v2743 = vrcp.pop %v2732
  %v2744 = vmul.f32 1.0, %v2743
  %v2745 = vrcp.pop %v2733
  %v2746 = vmul.f32 1.0, %v2745
  %v2747 = vrcp.pop %v2734
  %v2748 = vmul.f32 1.0, %v2747
  %v2749 = vrcp.pop %v2735
  %v2750 = vmul.f32 1.0, %v2749
  %v2751 = vrcp.pop %v2736
  %v2752 = vmul.f32 1.0, %v2751
  %v2753 = vmul.f32 %v2738, %v2667
  %v2754 = vmul.f32 %v2740, %v2670
  %v2755 = vmul.f32 %v2742, %v2675
  %v2756 = vmul.f32 %v2744, %v2678
  %v2757 = vmul.f32 %v2746, %v2683
  %v2758 = vmul.f32 %v2748, %v2686
  %v2759 = vmul.f32 %v2750, %v2691
  %v2760 = vmul.f32 %v2752, %v2694
  %v2761 = vpack.c.bf16 %v2754, %v2753
  %v2762 = vpack.c.bf16 %v2756, %v2755
  %v2763 = vpack.c.bf16 %v2758, %v2757
  %v2764 = vpack.c.bf16 %v2760, %v2759
  %v2765 = vld [vmem:[%s10] sm:$0xf]
  %v2766 = vld [vmem:[%s10 + $0x4] sm:$0xf]
  %v2767 = vld [vmem:[%s10 + $0x8] sm:$0xf]
  %v2768 = vld [vmem:[%s10 + $0xc] sm:$0xf]
  %v2769 = vld [vmem:[%s10 + $0x10] sm:$0xf]
  %v2770 = vld [vmem:[%s10 + $0x14] sm:$0xf]
  %v2771 = vld [vmem:[%s10 + $0x18] sm:$0xf]
  %v2772 = vld [vmem:[%s10 + $0x1c] sm:$0xf]
  %v2773 = vld [vmem:[%s10 + $0x20] sm:$0xf]
  %v2774 = vld [vmem:[%s10 + $0x24] sm:$0xf]
  %v2775 = vld [vmem:[%s10 + $0x28] sm:$0xf]
  %v2776 = vld [vmem:[%s10 + $0x2c] sm:$0xf]
  %v2777 = vld [vmem:[%s10 + $0x30] sm:$0xf]
  %v2778 = vld [vmem:[%s10 + $0x34] sm:$0xf]
  %v2779 = vld [vmem:[%s10 + $0x38] sm:$0xf]
  %v2780 = vld [vmem:[%s10 + $0x3c] sm:$0xf]
  %v2781 = vld [vmem:[%s11] sm:$0x1]
  %v2783 = vlaneseq
  %v2784 = vshrl.u32 %v2783, 7
  %v2785 = vsub.s32 0, %v2784
  %v2786 = vrot.slane %v2781, %v2785
  %v2804 = vunpack.c.l.b16 %v2765
  %v2805 = vunpack.c.l.b16 %v2766
  %v2806 = vunpack.c.l.b16 %v2767
  %v2807 = vunpack.c.l.b16 %v2768
  %v2808 = vunpack.c.l.b16 %v2769
  %v2809 = vunpack.c.l.b16 %v2770
  %v2810 = vunpack.c.l.b16 %v2771
  %v2811 = vunpack.c.l.b16 %v2772
  %v2812 = vunpack.c.l.b16 %v2773
  %v2813 = vunpack.c.l.b16 %v2774
  %v2814 = vunpack.c.l.b16 %v2775
  %v2815 = vunpack.c.l.b16 %v2776
  %v2816 = vunpack.c.l.b16 %v2777
  %v2817 = vunpack.c.l.b16 %v2778
  %v2818 = vunpack.c.l.b16 %v2779
  %v2819 = vunpack.c.l.b16 %v2780
  %v2820 = vpack.c.b16 %v2805, %v2804
  %v2821 = vpack.c.b16 %v2807, %v2806
  %v2822 = vpack.c.b16 %v2809, %v2808
  %v2823 = vpack.c.b16 %v2811, %v2810
  %v2824 = vpack.c.b16 %v2813, %v2812
  %v2825 = vpack.c.b16 %v2815, %v2814
  %v2826 = vpack.c.b16 %v2817, %v2816
  %v2827 = vpack.c.b16 %v2819, %v2818
  %2836 = vmatprep.subr.bf16.mxu0 0
  %2837 = vmatpush1.bf16.msra.mxu0 %v2827
  %2838 = vmatprep.subr.bf16.mxu0 0
  %2839 = vmatpush1.bf16.msra.mxu0 %v2826
  %2840 = vmatprep.subr.bf16.mxu0 0
  %2841 = vmatpush1.bf16.msra.mxu0 %v2825
  %2842 = vmatprep.subr.bf16.mxu0 0
  %2843 = vmatpush1.bf16.msra.mxu0 %v2824
  %2844 = vmatprep.subr.bf16.mxu0 0
  %2845 = vmatpush1.bf16.msra.mxu0 %v2823
  %2846 = vmatprep.subr.bf16.mxu0 0
  %2847 = vmatpush1.bf16.msra.mxu0 %v2822
  %2848 = vmatprep.subr.bf16.mxu0 0
  %2849 = vmatpush1.bf16.msra.mxu0 %v2821
  %2850 = vmatprep.subr.bf16.mxu0 0
  %2851 = vmatpush1.bf16.msra.mxu0 %v2820
  %2852 = vmatprep.subr.bf16.mxu0 0
  %2853 = vmatpush2.bf16.msra.mxu0 0
  %2854 = vmatprep.subr.bf16.mxu0 0
  %2855 = vmatpush2.bf16.msra.mxu0 0
  %2856 = vmatprep.subr.bf16.mxu0 0
  %2857 = vmatpush2.bf16.msra.mxu0 0
  %2858 = vmatprep.subr.bf16.mxu0 0
  %2859 = vmatpush2.bf16.msra.mxu0 0
  %2860 = vmatprep.subr.bf16.mxu0 0
  %2861 = vmatpush2.bf16.msra.mxu0 0
  %2862 = vmatprep.subr.bf16.mxu0 0
  %2863 = vmatpush2.bf16.msra.mxu0 0
  %2864 = vmatprep.subr.bf16.mxu0 0
  %2865 = vmatpush2.bf16.msra.mxu0 0
  %2866 = vmatprep.subr.bf16.mxu0 0
  %2867 = vmatpush2.bf16.msra.mxu0 0
  %2868 = vmatprep.mubr.bf16.mxu0 0
  %2869 = vmatmul.mubr.bf16.gmra.mxu0 %v2761
  %v2870 = vpop.f32.mrf.mxu0
  %v2871 = vadd.f32 %v2786, %v2870
  %v2872 = vpop.f32.mrf.mxu0
  %v2873 = vpop.f32.mrf.mxu0
  %v2874 = vadd.f32 %v2786, %v2873
  %v2875 = vpop.f32.mrf.mxu0
  %2876 = vmatprep.mubr.bf16.mxu0 0
  %2877 = vmatmul.mubr.bf16.gmra.mxu0 %v2762
  %v2878 = vpop.f32.mrf.mxu0
  %v2879 = vadd.f32 %v2786, %v2878
  %v2880 = vpop.f32.mrf.mxu0
  %v2881 = vpop.f32.mrf.mxu0
  %v2882 = vadd.f32 %v2786, %v2881
  %v2883 = vpop.f32.mrf.mxu0
  %2884 = vmatprep.mubr.bf16.mxu0 0
  %2885 = vmatmul.mubr.bf16.gmra.mxu0 %v2763
  %v2886 = vpop.f32.mrf.mxu0
  %v2887 = vadd.f32 %v2786, %v2886
  %v2888 = vpop.f32.mrf.mxu0
  %v2889 = vpop.f32.mrf.mxu0
  %v2890 = vadd.f32 %v2786, %v2889
  %v2891 = vpop.f32.mrf.mxu0
  %2892 = vmatprep.mubr.bf16.mxu0 0
  %2893 = vmatmul.mubr.bf16.gmra.mxu0 %v2764
  %v2894 = vpop.f32.mrf.mxu0
  %v2895 = vadd.f32 %v2786, %v2894
  %v2896 = vpop.f32.mrf.mxu0
  %v2897 = vpop.f32.mrf.mxu0
  %v2898 = vadd.f32 %v2786, %v2897
  %v2899 = vpop.f32.mrf.mxu0
  %2900 = vdwg.mxu0
  %v2901 = vadd.f32 %v2435, %v2871
  %v2902 = vadd.f32 %v2436, %v2874
  %v2903 = vadd.f32 %v2437, %v2879
  %v2904 = vadd.f32 %v2438, %v2882
  %v2905 = vadd.f32 %v2439, %v2887
  %v2906 = vadd.f32 %v2440, %v2890
  %v2907 = vadd.f32 %v2441, %v2895
  %v2908 = vadd.f32 %v2442, %v2898
  %2909 = vst.msk [vmem:[%s12] sm:$0xff] %vm50, %v2901
  %2910 = vst.msk [vmem:[%s12 + $0x8] sm:$0xff] %vm50, %v2902
  %2911 = vst.msk [vmem:[%s12 + $0x10] sm:$0xff] %vm50, %v2903
  %2912 = vst.msk [vmem:[%s12 + $0x18] sm:$0xff] %vm50, %v2904
  %2913 = vst.msk [vmem:[%s12 + $0x20] sm:$0xff] %vm50, %v2905
  %2914 = vst.msk [vmem:[%s12 + $0x28] sm:$0xff] %vm50, %v2906
  %2915 = vst.msk [vmem:[%s12 + $0x30] sm:$0xff] %vm50, %v2907
  %2916 = vst.msk [vmem:[%s12 + $0x38] sm:$0xff] %vm50, %v2908
  // Predicated region
  $region50: #{tpu_custom_call.1} parent=0 // pred_check
    _
  $region51: #{tpu_custom_call.1} parent=0 // pred_check_branch
    %2918 = sbr.rel (0) target = $region53
  $region52: #{tpu_custom_call.1} parent=0 // pred_region
    _
  $region53: #{tpu_custom_call.1} parent=0 // pred_fallthru
    _
  // Predicated region
  $region54: #{tpu_custom_call.1} parent=0 // pred_check
    _
  $region55: #{tpu_custom_call.1} parent=0 // pred_check_branch
    %2920 = sbr.rel (0) target = $region57
  $region56: #{tpu_custom_call.1} parent=0 // pred_region
    _
  $region57: #{tpu_custom_call.1} parent=0 // pred_fallthru
    _

</llo_original>
